<compile_context>
chip_gen: v6e
topology: v6e:2x2x1
jax: 0.10.0
libtpu: 0.0.40
codegen_flags: <defaults>
</compile_context>

<pallas_src>
import functools

import jax
import jax.numpy as jnp
import numpy as np
from jax.experimental import pallas as pl
from jax.experimental.pallas import tpu as pltpu


# ---------------------------------------------------------------------------
# Helpers: tile-size selection
# ---------------------------------------------------------------------------
def _pick_head_group(num_heads, head_dim):
    """Smallest G dividing num_heads with G*head_dim a multiple of 128 lanes."""
    for g in range(1, num_heads + 1):
        if num_heads % g == 0 and (g * head_dim) % 128 == 0:
            return g
    return num_heads  # tiny-model fallback: one group of all heads


def _pick_kv_tile(n_keys):
    for tk in (512, 256, 128):
        if n_keys > tk and n_keys % tk == 0:
            return tk
    return n_keys


def _pick_row_tile(m):
    if m <= 256:
        return m
    for t in (256, 128, 64, 32, 16, 8):
        if m % t == 0:
            return t
    return m


# ---------------------------------------------------------------------------
# Linear layers: y = x @ W (+ b), row-tiled over M = B*N, bf16 MXU + f32 accum
# ---------------------------------------------------------------------------
def _linear_kernel(x_ref, w_ref, o_ref):
    acc = jnp.dot(x_ref[...], w_ref[...], preferred_element_type=jnp.float32)
    o_ref[...] = acc.astype(o_ref.dtype)


def _linear_bias_kernel(x_ref, w_ref, b_ref, o_ref):
    acc = jnp.dot(x_ref[...], w_ref[...], preferred_element_type=jnp.float32)
    o_ref[...] = (acc + b_ref[...]).astype(o_ref.dtype)


def linear(x2d, w, b=None, *, mxu_dtype=jnp.bfloat16, out_dtype=jnp.float32):
    M, K = x2d.shape
    K2, Nout = w.shape
    assert K == K2
    tm = _pick_row_tile(M)
    grid = (M // tm,)

    x_spec = pl.BlockSpec((tm, K), lambda i: (i, 0))
    w_spec = pl.BlockSpec((K, Nout), lambda i: (0, 0))
    o_spec = pl.BlockSpec((tm, Nout), lambda i: (i, 0))
    cp = pltpu.CompilerParams(dimension_semantics=("parallel",))

    xc = x2d.astype(mxu_dtype)
    wc = w.astype(mxu_dtype)

    if b is None:  # qkv_bias=False path: no bias DMA / broadcast-add
        return pl.pallas_call(
            _linear_kernel,
            grid=grid,
            out_shape=jax.ShapeDtypeStruct((M, Nout), out_dtype),
            in_specs=[x_spec, w_spec],
            out_specs=o_spec,
            compiler_params=cp,
        )(xc, wc)

    b2 = b.reshape(1, Nout).astype(jnp.float32)
    b_spec = pl.BlockSpec((1, Nout), lambda i: (0, 0))
    return pl.pallas_call(
        _linear_bias_kernel,
        grid=grid,
        out_shape=jax.ShapeDtypeStruct((M, Nout), out_dtype),
        in_specs=[x_spec, w_spec, b_spec],
        out_specs=o_spec,
        compiler_params=cp,
    )(xc, wc, b2)


# ---------------------------------------------------------------------------
# KDE attention core: grid = (batch, head_group, kv_tile), online softmax
# ---------------------------------------------------------------------------
def _kde_attn_kernel(q_ref, k_ref, v_ref, o_ref, m_sc, l_sc, acc_sc, *,
                     group, head_dim, scale, mxu_dtype, exp_dtype):
    kv = pl.program_id(2)
    n_kv = pl.num_programs(2)

    @pl.when(kv == 0)
    def _init():
        m_sc[...] = jnp.full_like(m_sc, -jnp.inf)
        l_sc[...] = jnp.zeros_like(l_sc)
        acc_sc[...] = jnp.zeros_like(acc_sc)

    for h in range(group):  # small static unroll (G = 128 // head_dim heads)
        lo = h * head_dim
        hi = lo + head_dim

        # Ref-level static slices (zero-cost address arithmetic).
        qh = q_ref[0, :, lo:hi].astype(jnp.float32)   # (N,  D)
        kh = k_ref[0, :, lo:hi].astype(jnp.float32)   # (tk, D)
        vh = v_ref[0, :, lo:hi]                       # (tk, D) storage dtype

        # F.normalize(k, dim=-1): k / max(||k||, 1e-12)   (rsqrt -> EUP slot)
        ksq = jnp.sum(kh * kh, axis=-1, keepdims=True)
        kn = kh * jax.lax.rsqrt(jnp.maximum(ksq, 1e-24))

        # softmax_j(-scale*||q_i - kn_j||^2) == softmax_j(2*scale * q_i.kn_j).
        # Fold 2*scale into q (N*D mults) before the MXU cast.
        qs = (qh * (2.0 * scale)).astype(mxu_dtype)
        s = jax.lax.dot_general(
            qs, kn.astype(mxu_dtype),
            dimension_numbers=(((1,), (1,)), ((), ())),
            preferred_element_type=jnp.float32)       # (N, tk) f32

        m_prev = m_sc[:, h:h + 1]                     # (N, 1) f32
        l_prev = l_sc[:, h:h + 1]
        m_new = jnp.maximum(m_prev, jnp.max(s, axis=-1, keepdims=True))
        alpha = jnp.exp(m_prev - m_new)               # (N, 1) f32 rescale

        # exp on bf16 inputs (v6e/v7x bf16 EUP); f32 row-sum accumulation.
        p = jnp.exp((s - m_new).astype(exp_dtype))    # (N, tk), values <= 1
        l_new = alpha * l_prev + jnp.sum(p.astype(jnp.float32),
                                         axis=-1, keepdims=True)

        pv = jax.lax.dot_general(
            p.astype(mxu_dtype), vh.astype(mxu_dtype),
            dimension_numbers=(((1,), (0,)), ((), ())),
            preferred_element_type=jnp.float32)       # (N, D) f32

        acc_sc[:, lo:hi] = alpha * acc_sc[:, lo:hi] + pv
        m_sc[:, h:h + 1] = m_new
        l_sc[:, h:h + 1] = l_new

    @pl.when(kv == n_kv - 1)
    def _finalize():
        # Deferred softmax normalization: acc * (1/l), then ONE lane-dense
        # unmasked (N, G*D) store into the (B, N, C)-layout output block.
        outs = []
        for h in range(group):
            lo = h * head_dim
            inv = pl.reciprocal(l_sc[:, h:h + 1], approx=True)   # (N, 1)
            outs.append(acc_sc[:, lo:lo + head_dim] * inv)
        o_ref[0] = jnp.concatenate(outs, axis=-1).astype(o_ref.dtype)


def kde_attention_core(qkv, num_heads, scale, *, mxu_dtype, exp_dtype):
    B, N, C3 = qkv.shape
    C = C3 // 3
    D = C // num_heads
    G = _pick_head_group(num_heads, D)
    GD = G * D
    n_hg = num_heads // G
    tk = _pick_kv_tile(N)
    n_kv = N // tk

    kern = functools.partial(
        _kde_attn_kernel, group=G, head_dim=D, scale=scale,
        mxu_dtype=mxu_dtype, exp_dtype=exp_dtype)

    # Three lane-dense views of the SAME fused qkv slab: q / k / v blocks of
    # head-group g live at last-axis block indices g, n_hg+g, 2*n_hg+g.
    q_spec = pl.BlockSpec((1, N, GD), lambda b, g, kv: (b, 0, g))
    k_spec = pl.BlockSpec((1, tk, GD), lambda b, g, kv: (b, kv, n_hg + g))
    v_spec = pl.BlockSpec((1, tk, GD), lambda b, g, kv: (b, kv, 2 * n_hg + g))
    o_spec = pl.BlockSpec((1, N, GD), lambda b, g, kv: (b, 0, g))

    return pl.pallas_call(
        kern,
        grid=(B, n_hg, n_kv),
        out_shape=jax.ShapeDtypeStruct((B, N, C), qkv.dtype),
        in_specs=[q_spec, k_spec, v_spec],
        out_specs=o_spec,
        scratch_shapes=[
            pltpu.VMEM((N, G), jnp.float32),    # running max per head
            pltpu.VMEM((N, G), jnp.float32),    # running row-sum per head
            pltpu.VMEM((N, GD), jnp.float32),   # unnormalized output accum
        ],
        compiler_params=pltpu.CompilerParams(
            dimension_semantics=("parallel", "parallel", "arbitrary")),
    )(qkv, qkv, qkv)


# ---------------------------------------------------------------------------
# Full forward (glue reshapes are free; hot paths are Pallas)
# ---------------------------------------------------------------------------
def kde_attention_forward(x, params, num_heads, *, dtype=jnp.bfloat16,
                          exp_dtype=None):
    B, N, C = x.shape
    assert C % num_heads == 0
    D = C // num_heads
    scale = D ** (-0.5)
    if exp_dtype is None:
        exp_dtype = dtype  # use jnp.float32 on v5e (no bf16 EUP) if desired

    qkv = linear(x.reshape(B * N, C), params["w_qkv"], None,
                 mxu_dtype=dtype, out_dtype=dtype)          # (B*N, 3C)
    qkv = qkv.reshape(B, N, 3 * C)                          # free reshape

    out = kde_attention_core(qkv, num_heads, scale,
                             mxu_dtype=dtype, exp_dtype=exp_dtype)  # (B, N, C)

    out = linear(out.reshape(B * N, C), params["w_proj"], params["b_proj"],
                 mxu_dtype=dtype, out_dtype=jnp.float32)
    return out.reshape(B, N, C)


# ---------------------------------------------------------------------------
# Pure-JAX reference mirroring the PyTorch forward, for verification
# ---------------------------------------------------------------------------
def reference_forward(x, params, num_heads):
    B, N, C = x.shape
    H = num_heads
    D = C // H
    scale = D ** (-0.5)

    qkv = x @ params["w_qkv"]                                   # bias=False
    qkv = qkv.reshape(B, N, 3, H, D).transpose(2, 0, 3, 1, 4)
    q, k, v = qkv[0], qkv[1], qkv[2]                            # (B, H, N, D)

    kn = k / jnp.maximum(jnp.linalg.norm(k, axis=-1, keepdims=True), 1e-12)
    diff = q[:, :, :, None, :] - kn[:, :, None, :, :]
    d2 = jnp.sum(diff * diff, axis=-1)                          # (B, H, N, N)
    attn = jax.nn.softmax(-scale * d2, axis=-1)
    o = jnp.einsum("bhij,bhjd->bhid", attn, v)
    o = o.transpose(0, 2, 1, 3).reshape(B, N, C)
    return o @ params["w_proj"] + params["b_proj"]


if __name__ == "__main__":
    # head_dim = 32  ->  head-group G = 4 (G*D = 128 lanes), n_hg = 2
    # N = 256, kv tile = 128  ->  two online-softmax key steps get exercised.
    B, N, C, H = 2, 256, 256, 8

    key = jax.random.PRNGKey(0)
    kx, kqkv, kproj_w, kproj_b = jax.random.split(key, 4)

    x = jax.random.normal(kx, (B, N, C), dtype=jnp.float32)
    params = {
        # nn.Linear(dim, 3*dim, bias=False) stored as (in, out)
        "w_qkv": jax.random.normal(kqkv, (C, 3 * C), dtype=jnp.float32) * 0.1,
        # nn.Linear(dim, dim) with bias
        "w_proj": jax.random.normal(kproj_w, (C, C), dtype=jnp.float32) * 0.05,
        "b_proj": jax.random.normal(kproj_b, (C,), dtype=jnp.float32) * 0.05,
    }

    with jax.default_matmul_precision("highest"):
        ref = jax.block_until_ready(reference_forward(x, params, H))

    # f32 path: checks the algebra / tiling / online softmax precisely.
    out_f32 = jax.block_until_ready(
        kde_attention_forward(x, params, H, dtype=jnp.float32))
    np.testing.assert_allclose(np.asarray(out_f32), np.asarray(ref),
                               rtol=5e-3, atol=5e-3)

    # bf16 path (default performance configuration).
    out_bf16 = jax.block_until_ready(kde_attention_forward(x, params, H))
    np.testing.assert_allclose(np.asarray(out_bf16), np.asarray(ref),
                               rtol=5e-2, atol=5e-2)

    print("KERNEL_OK")
</pallas_src>

<mosaic_0001>
module attributes {stable_mosaic.version = 11 : i64} {
  func.func @_linear_kernel(%arg0: i32, %arg1: memref<256x256xf32, #tpu.memory_space<vmem>>, %arg2: memref<256x768xf32, #tpu.memory_space<vmem>>, %arg3: memref<256x768xf32, #tpu.memory_space<vmem>>) attributes {dimension_semantics = [#tpu.dimension_semantics<parallel>], iteration_bounds = array<i64: 2>, scalar_prefetch = 0 : i64, scratch_operands = 0 : i64, tpu.core_type = #tpu.core_type<tc>, window_params = [{transform_indices = @transform_0, window_bounds = array<i64: 256, 256>}, {pipeline_mode = #tpu.pipeline_mode<synchronous>, transform_indices = @transform_1, window_bounds = array<i64: 256, 768>}, {transform_indices = @transform_2, window_bounds = array<i64: 256, 768>}]} {
    %c0 = arith.constant 0 : index
    %c0_0 = arith.constant 0 : index
    %0 = vector.load %arg1[%c0, %c0_0] : memref<256x256xf32, #tpu.memory_space<vmem>>, vector<256x256xf32>
    %c0_1 = arith.constant 0 : index
    %c0_2 = arith.constant 0 : index
    %1 = vector.load %arg2[%c0_1, %c0_2] : memref<256x768xf32, #tpu.memory_space<vmem>>, vector<256x768xf32>
    %cst = arith.constant dense<0.000000e+00> : vector<256x768xf32>
    %2 = tpu.matmul %0, %1, %cst {dimension_numbers = #tpu.dot_dimension_numbers<[1], [0], [0], [1], [0, 0, 1, 1], [], []>} : vector<256x256xf32>, vector<256x768xf32>, vector<256x768xf32> -> vector<256x768xf32>
    %c0_3 = arith.constant 0 : index
    %c0_4 = arith.constant 0 : index
    %3 = vector.load %arg3[%c0_3, %c0_4] : memref<256x768xf32, #tpu.memory_space<vmem>>, vector<256x768xf32>
    tpu.vector_store %arg3[%c0_3, %c0_4], %2 {strides = array<i32>} : memref<256x768xf32, #tpu.memory_space<vmem>>, vector<256x768xf32>,
    return
  }
  func.func @transform_0(%arg0: i32) -> (i32, i32) {
    %c0_i32 = arith.constant 0 : i32
    %c0_i32_0 = arith.constant 0 : i32
    return %arg0, %c0_i32 : i32, i32
  }
  func.func @transform_1(%arg0: i32) -> (i32, i32) {
    %c0_i32 = arith.constant 0 : i32
    %c0_i32_0 = arith.constant 0 : i32
    %c0_i32_1 = arith.constant 0 : i32
    return %c0_i32, %c0_i32_0 : i32, i32
  }
  func.func @transform_2(%arg0: i32) -> (i32, i32) {
    %c0_i32 = arith.constant 0 : i32
    %c0_i32_0 = arith.constant 0 : i32
    return %arg0, %c0_i32 : i32, i32
  }
}

</mosaic_0001>

<llo_original>
// kernel: tpu_custom_call.1
$region0: #{tpu_custom_call.1}
  #allocation0 [shape = 'u32[]', space=smem, size = 0x4, offset = 0x4, fixed_abs, tag = 'smem constant byte address 0x4 - core index']
  #allocation1 [shape = 'u32[144,128]{1,0:T(1,128)}', space=vmem, size = 0x12000, scoped, tag = 'internal scratch']
  %s0 = inlined_call_operand.hbm [shape: f32[512,256], index: 0, kind: input, shape index: {}]
  %s1 = inlined_call_operand.hbm [shape: f32[256,768], index: 1, kind: input, shape index: {}]
  %s2 = inlined_call_operand.hbm [shape: f32[512,768], index: 2, kind: output, shape index: {}]
  %s3 = sld [smem:[#allocation0]]
  $region49: #{tpu_custom_call.1} parent=0
    _
  %s5 = ssub.s32 1, %s3
  %s6 = scalar_select 0, %s5, %s3
  $region1: #{tpu_custom_call.1} parent=0
    #allocation2 [shape = 'u8[524288]{0}', space=vmem, size = 0x80000, scoped, tag = 'input window, operand 0']
    #allocation3 [shape = 's32[2]{0}', space=sflag, size = 0x8, scoped, tag = 'scoped memory for tpu_custom_call.1']
    #allocation4 [shape = 's32[2]{0}', space=sflag, size = 0x8, scoped, tag = 'scoped memory for tpu_custom_call.1']
    #allocation5 [shape = 'u8[786432]{0}', space=vmem, size = 0xc0000, scoped, tag = 'input window, operand 1, single buffered']
    #allocation6 [shape = 's32[1]{0}', space=sflag, size = 0x4, scoped, tag = 'scoped memory for tpu_custom_call.1']
    #allocation7 [shape = 'u8[1572864]{0}', space=vmem, size = 0x180000, scoped, tag = 'output window, operand 0']
    %7 = vsyncpa [#allocation3], 0
    %s8 = scalar_lea.sflag [#allocation3], 1
    %9 = vsyncpa %s8, 0
    %10 = vsyncpa [#allocation6], 0
    %11 = vsyncpa [#allocation4], 0
    %s12 = scalar_lea.sflag [#allocation4], 1
    %13 = vsyncpa %s12, 0
    loop: start=0, step=1, limit=4
    $region2: #{tpu_custom_call.1} parent=1 // loop_pre_header
      _
    $region3: #{tpu_custom_call.1} parent=1 // loop_header
      %s15 = sphi 0, %s19
      %p16 = scmp.ge.s32.totalorder %s15, 4
      %s25 = sphi 0, %s27
      %s28 = sphi 0, %s25
      %s29 = sphi 0, %s28
      %s45 = sphi 0, %s29
      %s49 = sphi 0, %s49
      %s51 = sphi 0, %s49
      %s52 = sphi 0, %s51
      %s66 = sphi 0, %s52
      %s72 = sphi 0, %s74
      %s75 = sphi 0, %s72
      %s76 = sphi 0, %s75
      %s92 = sphi 0, %s76
    $region4: #{tpu_custom_call.1} parent=1 // loop_header_branch
      %18 = sbr.rel (%p16) target = $region8
    $region5: #{tpu_custom_call.1} parent=1 // loop_body
      %s20 = ssub.s32 %s15, 1
      %s21 = ssub.s32 %s15, 2
      %s22 = sadd.s32 %s15, 1
      %s23 = ssub.s32 %s15, %s22
      %p24 = scmp.eq.s32.totalorder %s23, 0
      %s26 = sadd.s32 %s25, 1
      %s27 = scalar_select %p24, %s25, %s26
      %p30 = pneg %p24
      %p31 = scmp.eq.s32.totalorder %s15, 1
      %p32 = por %p30, %p31
      %p33 = scmp.ne.s32.totalorder %s25, %s28
      %p34 = scmp.eq.s32.totalorder %s15, 0
      %p35 = por %p33, %p34
      %p36 = scmp.ne.s32.totalorder %s25, %s28
      %p37 = scmp.eq.s32.totalorder %s20, 1
      %p38 = por %p36, %p37
      %p39 = scmp.ne.s32.totalorder %s28, %s29
      %p40 = scmp.eq.s32.totalorder %s20, 0
      %p41 = por %p39, %p40
      %p42 = scmp.ne.s32.totalorder %s28, %s29
      %p43 = scmp.eq.s32.totalorder %s21, 1
      %p44 = por %p42, %p43
      %p46 = scmp.ne.s32.totalorder %s29, %s45
      %p47 = scmp.eq.s32.totalorder %s21, 0
      %p48 = por %p46, %p47
      %s50 = sadd.s32 %s49, 1
      %p53 = scmp.eq.s32.totalorder %s15, 1
      %p54 = scmp.ne.s32.totalorder %s49, %s51
      %p55 = scmp.eq.s32.totalorder %s15, 0
      %p56 = por %p54, %p55
      %p57 = scmp.ne.s32.totalorder %s49, %s51
      %p58 = scmp.eq.s32.totalorder %s20, 1
      %p59 = por %p57, %p58
      %p60 = scmp.ne.s32.totalorder %s51, %s52
      %p61 = scmp.eq.s32.totalorder %s20, 0
      %p62 = por %p60, %p61
      %p63 = scmp.ne.s32.totalorder %s51, %s52
      %p64 = scmp.eq.s32.totalorder %s21, 1
      %p65 = por %p63, %p64
      %p67 = scmp.ne.s32.totalorder %s52, %s66
      %p68 = scmp.eq.s32.totalorder %s21, 0
      %p69 = por %p67, %p68
      %s70 = ssub.s32 %s15, %s22
      %p71 = scmp.eq.s32.totalorder %s70, 0
      %s73 = sadd.s32 %s72, 1
      %s74 = scalar_select %p71, %s72, %s73
      %p77 = pneg %p71
      %p78 = scmp.eq.s32.totalorder %s15, 1
      %p79 = por %p77, %p78
      %p80 = scmp.ne.s32.totalorder %s72, %s75
      %p81 = scmp.eq.s32.totalorder %s15, 0
      %p82 = por %p80, %p81
      %p83 = scmp.ne.s32.totalorder %s72, %s75
      %p84 = scmp.eq.s32.totalorder %s20, 1
      %p85 = por %p83, %p84
      %p86 = scmp.ne.s32.totalorder %s75, %s76
      %p87 = scmp.eq.s32.totalorder %s20, 0
      %p88 = por %p86, %p87
      %p89 = scmp.ne.s32.totalorder %s75, %s76
      %p90 = scmp.eq.s32.totalorder %s21, 1
      %p91 = por %p89, %p90
      %p93 = scmp.ne.s32.totalorder %s76, %s92
      %p94 = scmp.eq.s32.totalorder %s21, 0
      %p95 = por %p93, %p94
      %p96 = scmp.le.s32.totalorder 1, %s15
      %p97 = scmp.lt.s32.totalorder %s15, 3
      %p98 = pnand %p96, %p97
      %p99 = pneg %p98
      // Predicated region
      $region9: #{tpu_custom_call.1} parent=5 // pred_check
        _
      $region10: #{tpu_custom_call.1} parent=5 // pred_check_branch
        %101 = sbr.rel (%p98) target = $region12
      $region11: #{tpu_custom_call.1} parent=5 // pred_region
        %s102 = ssub.s32 %s15, 1
        // Predicated region
        $region13: #{tpu_custom_call.1} parent=11 // pred_check
          %p103 = pneg %p62
        $region14: #{tpu_custom_call.1} parent=11 // pred_check_branch
          %105 = sbr.rel (%p103) target = $region16
        $region15: #{tpu_custom_call.1} parent=11 // pred_region
          %s107 = ssub.s32 24576, 24576
          %108 = vsyncadd [#allocation6], %s107
          %s109 = sshll.u32 [#allocation5], 4
          %s110 = int_to_ptr.vmem [resolvable:$true] %s109
          %115 = dma.hbm_to_vmem [thread:$0]  %s1, 24576, %s110, [#allocation6], 768, 768, 48
        $region16: #{tpu_custom_call.1} parent=11 // pred_fallthru
          _
      $region12: #{tpu_custom_call.1} parent=5 // pred_fallthru
        _
      %p116 = scmp.lt.s32.totalorder %s15, 2
      // Predicated region
      $region17: #{tpu_custom_call.1} parent=5 // pred_check
        %p117 = pneg %p116
      $region18: #{tpu_custom_call.1} parent=5 // pred_check_branch
        %119 = sbr.rel (%p117) target = $region20
      $region19: #{tpu_custom_call.1} parent=5 // pred_region
        // Predicated region
        $region21: #{tpu_custom_call.1} parent=19 // pred_check
          %p120 = pneg %p35
        $region22: #{tpu_custom_call.1} parent=19 // pred_check_branch
          %122 = sbr.rel (%p120) target = $region24
        $region23: #{tpu_custom_call.1} parent=19 // pred_region
          %s123 = sand.u32 %s25, 1
          %s124 = scalar_lea.sflag [#allocation3], %s123
          %s125 = sand.u32 %s25, 1
          %s126 = smul.addr %s125, 512
          %s127 = scalar_lea.vmem [#allocation2], %s126
          %s128 = smul.u32 32, %s15
          %s130 = ssub.s32 8192, 8192
          %131 = vsyncadd %s124, %s130
          %s132 = smul.addr %s128, 2
          %s133 = smul.addr %s132, 128
          %s134 = scalar_lea.hbm %s0, %s133
          %s135 = sshll.u32 %s127, 4
          %s136 = int_to_ptr.vmem [resolvable:$true] %s135
          %141 = dma.hbm_to_vmem [thread:$0]  %s134, 8192, %s136, %s124, 256, 256, 16
        $region24: #{tpu_custom_call.1} parent=19 // pred_fallthru
          _
      $region20: #{tpu_custom_call.1} parent=5 // pred_fallthru
        _
      %p142 = scmp.le.s32.totalorder 1, %s15
      %p143 = scmp.lt.s32.totalorder %s15, 3
      %p144 = pnand %p142, %p143
      %p145 = pneg %p144
      // Predicated region
      $region25: #{tpu_custom_call.1} parent=5 // pred_check
        _
      $region26: #{tpu_custom_call.1} parent=5 // pred_check_branch
        %147 = sbr.rel (%p144) target = $region28
      $region27: #{tpu_custom_call.1} parent=5 // pred_region
        %s148 = ssub.s32 %s15, 1
        %s149 = sand.u32 %s28, 1
        %s150 = scalar_lea.sflag [#allocation3], %s149
        %s151 = sand.u32 %s28, 1
        %s152 = smul.addr %s151, 512
        %s153 = scalar_lea.vmem [#allocation2], %s152
        // Predicated region
        $region29: #{tpu_custom_call.1} parent=27 // pred_check
          %p154 = pneg %p41
        $region30: #{tpu_custom_call.1} parent=27 // pred_check_branch
          %156 = sbr.rel (%p154) target = $region32
        $region31: #{tpu_custom_call.1} parent=27 // pred_region
          %157 = dma.done %s150, 8192
        $region32: #{tpu_custom_call.1} parent=27 // pred_fallthru
          _
        // Predicated region
        $region33: #{tpu_custom_call.1} parent=27 // pred_check
          %p158 = pneg %p62
        $region34: #{tpu_custom_call.1} parent=27 // pred_check_branch
          %160 = sbr.rel (%p158) target = $region36
        $region35: #{tpu_custom_call.1} parent=27 // pred_region
          %161 = dma.done [#allocation6], 24576
        $region36: #{tpu_custom_call.1} parent=27 // pred_fallthru
          _
        %s162 = sand.u32 %s28, 1
        %s163 = scalar_lea.sflag [#allocation3], %s162
        %s164 = sand.u32 %s28, 1
        %s165 = smul.addr %s164, 512
        %s166 = scalar_lea.vmem [#allocation2], %s165
        %p167 = pneg %p41
        %p168 = pneg %p38
        %p169 = pneg %p62
        %p170 = pneg %p59
        %p171 = pneg %p88
        %p172 = pneg %p85
        %s173 = sand.u32 %s75, 1
        %s174 = scalar_lea.sflag [#allocation4], %s173
        %s175 = sand.u32 %s75, 1
        %s176 = smul.addr %s175, 1536
        %s177 = scalar_lea.vmem [#allocation7], %s176
        %s178 = smul.u32 32, %s20
        %s179 = smul.u32 32, %s20
        %v180 = vld [vmem:[%s153] sm:$0xff]
        %v181 = vld [vmem:[%s153 + $0x8] sm:$0xff]
        %v182 = vld [vmem:[%s153 + $0x10] sm:$0xff]
        %v183 = vld [vmem:[%s153 + $0x18] sm:$0xff]
        %v184 = vld [vmem:[%s153 + $0x20] sm:$0xff]
        %v185 = vld [vmem:[%s153 + $0x28] sm:$0xff]
        %v186 = vld [vmem:[%s153 + $0x30] sm:$0xff]
        %v187 = vld [vmem:[%s153 + $0x38] sm:$0xff]
        %v188 = vld [vmem:[%s153 + $0x40] sm:$0xff]
        %v189 = vld [vmem:[%s153 + $0x48] sm:$0xff]
        %v190 = vld [vmem:[%s153 + $0x50] sm:$0xff]
        %v191 = vld [vmem:[%s153 + $0x58] sm:$0xff]
        %v192 = vld [vmem:[%s153 + $0x60] sm:$0xff]
        %v193 = vld [vmem:[%s153 + $0x68] sm:$0xff]
        %v194 = vld [vmem:[%s153 + $0x70] sm:$0xff]
        %v195 = vld [vmem:[%s153 + $0x78] sm:$0xff]
        %v196 = vld [vmem:[%s153 + $0x80] sm:$0xff]
        %v197 = vld [vmem:[%s153 + $0x88] sm:$0xff]
        %v198 = vld [vmem:[%s153 + $0x90] sm:$0xff]
        %v199 = vld [vmem:[%s153 + $0x98] sm:$0xff]
        %v200 = vld [vmem:[%s153 + $0xa0] sm:$0xff]
        %v201 = vld [vmem:[%s153 + $0xa8] sm:$0xff]
        %v202 = vld [vmem:[%s153 + $0xb0] sm:$0xff]
        %v203 = vld [vmem:[%s153 + $0xb8] sm:$0xff]
        %v204 = vld [vmem:[%s153 + $0xc0] sm:$0xff]
        %v205 = vld [vmem:[%s153 + $0xc8] sm:$0xff]
        %v206 = vld [vmem:[%s153 + $0xd0] sm:$0xff]
        %v207 = vld [vmem:[%s153 + $0xd8] sm:$0xff]
        %v208 = vld [vmem:[%s153 + $0xe0] sm:$0xff]
        %v209 = vld [vmem:[%s153 + $0xe8] sm:$0xff]
        %v210 = vld [vmem:[%s153 + $0xf0] sm:$0xff]
        %v211 = vld [vmem:[%s153 + $0xf8] sm:$0xff]
        %v212 = vld [vmem:[%s153 + $0x100] sm:$0xff]
        %v213 = vld [vmem:[%s153 + $0x108] sm:$0xff]
        %v214 = vld [vmem:[%s153 + $0x110] sm:$0xff]
        %v215 = vld [vmem:[%s153 + $0x118] sm:$0xff]
        %v216 = vld [vmem:[%s153 + $0x120] sm:$0xff]
        %v217 = vld [vmem:[%s153 + $0x128] sm:$0xff]
        %v218 = vld [vmem:[%s153 + $0x130] sm:$0xff]
        %v219 = vld [vmem:[%s153 + $0x138] sm:$0xff]
        %v220 = vld [vmem:[%s153 + $0x140] sm:$0xff]
        %v221 = vld [vmem:[%s153 + $0x148] sm:$0xff]
        %v222 = vld [vmem:[%s153 + $0x150] sm:$0xff]
        %v223 = vld [vmem:[%s153 + $0x158] sm:$0xff]
        %v224 = vld [vmem:[%s153 + $0x160] sm:$0xff]
        %v225 = vld [vmem:[%s153 + $0x168] sm:$0xff]
        %v226 = vld [vmem:[%s153 + $0x170] sm:$0xff]
        %v227 = vld [vmem:[%s153 + $0x178] sm:$0xff]
        %v228 = vld [vmem:[%s153 + $0x180] sm:$0xff]
        %v229 = vld [vmem:[%s153 + $0x188] sm:$0xff]
        %v230 = vld [vmem:[%s153 + $0x190] sm:$0xff]
        %v231 = vld [vmem:[%s153 + $0x198] sm:$0xff]
        %v232 = vld [vmem:[%s153 + $0x1a0] sm:$0xff]
        %v233 = vld [vmem:[%s153 + $0x1a8] sm:$0xff]
        %v234 = vld [vmem:[%s153 + $0x1b0] sm:$0xff]
        %v235 = vld [vmem:[%s153 + $0x1b8] sm:$0xff]
        %v236 = vld [vmem:[%s153 + $0x1c0] sm:$0xff]
        %v237 = vld [vmem:[%s153 + $0x1c8] sm:$0xff]
        %v238 = vld [vmem:[%s153 + $0x1d0] sm:$0xff]
        %v239 = vld [vmem:[%s153 + $0x1d8] sm:$0xff]
        %v240 = vld [vmem:[%s153 + $0x1e0] sm:$0xff]
        %v241 = vld [vmem:[%s153 + $0x1e8] sm:$0xff]
        %v242 = vld [vmem:[%s153 + $0x1f0] sm:$0xff]
        %v243 = vld [vmem:[%s153 + $0x1f8] sm:$0xff]
        %v244 = vld [vmem:[#allocation5] sm:$0xff]
        %v245 = vld [vmem:[#allocation5 + $0x8] sm:$0xff]
        %v246 = vld [vmem:[#allocation5 + $0x10] sm:$0xff]
        %v247 = vld [vmem:[#allocation5 + $0x18] sm:$0xff]
        %v248 = vld [vmem:[#allocation5 + $0x20] sm:$0xff]
        %v249 = vld [vmem:[#allocation5 + $0x28] sm:$0xff]
        %v250 = vld [vmem:[#allocation5 + $0x30] sm:$0xff]
        %v251 = vld [vmem:[#allocation5 + $0x38] sm:$0xff]
        %v252 = vld [vmem:[#allocation5 + $0x40] sm:$0xff]
        %v253 = vld [vmem:[#allocation5 + $0x48] sm:$0xff]
        %v254 = vld [vmem:[#allocation5 + $0x50] sm:$0xff]
        %v255 = vld [vmem:[#allocation5 + $0x58] sm:$0xff]
        %v256 = vld [vmem:[#allocation5 + $0x60] sm:$0xff]
        %v257 = vld [vmem:[#allocation5 + $0x68] sm:$0xff]
        %v258 = vld [vmem:[#allocation5 + $0x70] sm:$0xff]
        %v259 = vld [vmem:[#allocation5 + $0x78] sm:$0xff]
        %v260 = vld [vmem:[#allocation5 + $0x80] sm:$0xff]
        %v261 = vld [vmem:[#allocation5 + $0x88] sm:$0xff]
        %v262 = vld [vmem:[#allocation5 + $0x90] sm:$0xff]
        %v263 = vld [vmem:[#allocation5 + $0x98] sm:$0xff]
        %v264 = vld [vmem:[#allocation5 + $0xa0] sm:$0xff]
        %v265 = vld [vmem:[#allocation5 + $0xa8] sm:$0xff]
        %v266 = vld [vmem:[#allocation5 + $0xb0] sm:$0xff]
        %v267 = vld [vmem:[#allocation5 + $0xb8] sm:$0xff]
        %v268 = vld [vmem:[#allocation5 + $0xc0] sm:$0xff]
        %v269 = vld [vmem:[#allocation5 + $0xc8] sm:$0xff]
        %v270 = vld [vmem:[#allocation5 + $0xd0] sm:$0xff]
        %v271 = vld [vmem:[#allocation5 + $0xd8] sm:$0xff]
        %v272 = vld [vmem:[#allocation5 + $0xe0] sm:$0xff]
        %v273 = vld [vmem:[#allocation5 + $0xe8] sm:$0xff]
        %v274 = vld [vmem:[#allocation5 + $0xf0] sm:$0xff]
        %v275 = vld [vmem:[#allocation5 + $0xf8] sm:$0xff]
        %v276 = vld [vmem:[#allocation5 + $0x100] sm:$0xff]
        %v277 = vld [vmem:[#allocation5 + $0x108] sm:$0xff]
        %v278 = vld [vmem:[#allocation5 + $0x110] sm:$0xff]
        %v279 = vld [vmem:[#allocation5 + $0x118] sm:$0xff]
        %v280 = vld [vmem:[#allocation5 + $0x120] sm:$0xff]
        %v281 = vld [vmem:[#allocation5 + $0x128] sm:$0xff]
        %v282 = vld [vmem:[#allocation5 + $0x130] sm:$0xff]
        %v283 = vld [vmem:[#allocation5 + $0x138] sm:$0xff]
        %v284 = vld [vmem:[#allocation5 + $0x140] sm:$0xff]
        %v285 = vld [vmem:[#allocation5 + $0x148] sm:$0xff]
        %v286 = vld [vmem:[#allocation5 + $0x150] sm:$0xff]
        %v287 = vld [vmem:[#allocation5 + $0x158] sm:$0xff]
        %v288 = vld [vmem:[#allocation5 + $0x160] sm:$0xff]
        %v289 = vld [vmem:[#allocation5 + $0x168] sm:$0xff]
        %v290 = vld [vmem:[#allocation5 + $0x170] sm:$0xff]
        %v291 = vld [vmem:[#allocation5 + $0x178] sm:$0xff]
        %v292 = vld [vmem:[#allocation5 + $0x180] sm:$0xff]
        %v293 = vld [vmem:[#allocation5 + $0x188] sm:$0xff]
        %v294 = vld [vmem:[#allocation5 + $0x190] sm:$0xff]
        %v295 = vld [vmem:[#allocation5 + $0x198] sm:$0xff]
        %v296 = vld [vmem:[#allocation5 + $0x1a0] sm:$0xff]
        %v297 = vld [vmem:[#allocation5 + $0x1a8] sm:$0xff]
        %v298 = vld [vmem:[#allocation5 + $0x1b0] sm:$0xff]
        %v299 = vld [vmem:[#allocation5 + $0x1b8] sm:$0xff]
        %v300 = vld [vmem:[#allocation5 + $0x1c0] sm:$0xff]
        %v301 = vld [vmem:[#allocation5 + $0x1c8] sm:$0xff]
        %v302 = vld [vmem:[#allocation5 + $0x1d0] sm:$0xff]
        %v303 = vld [vmem:[#allocation5 + $0x1d8] sm:$0xff]
        %v304 = vld [vmem:[#allocation5 + $0x1e0] sm:$0xff]
        %v305 = vld [vmem:[#allocation5 + $0x1e8] sm:$0xff]
        %v306 = vld [vmem:[#allocation5 + $0x1f0] sm:$0xff]
        %v307 = vld [vmem:[#allocation5 + $0x1f8] sm:$0xff]
        %v308 = vld [vmem:[#allocation5 + $0x200] sm:$0xff]
        %v309 = vld [vmem:[#allocation5 + $0x208] sm:$0xff]
        %v310 = vld [vmem:[#allocation5 + $0x210] sm:$0xff]
        %v311 = vld [vmem:[#allocation5 + $0x218] sm:$0xff]
        %v312 = vld [vmem:[#allocation5 + $0x220] sm:$0xff]
        %v313 = vld [vmem:[#allocation5 + $0x228] sm:$0xff]
        %v314 = vld [vmem:[#allocation5 + $0x230] sm:$0xff]
        %v315 = vld [vmem:[#allocation5 + $0x238] sm:$0xff]
        %v316 = vld [vmem:[#allocation5 + $0x240] sm:$0xff]
        %v317 = vld [vmem:[#allocation5 + $0x248] sm:$0xff]
        %v318 = vld [vmem:[#allocation5 + $0x250] sm:$0xff]
        %v319 = vld [vmem:[#allocation5 + $0x258] sm:$0xff]
        %v320 = vld [vmem:[#allocation5 + $0x260] sm:$0xff]
        %v321 = vld [vmem:[#allocation5 + $0x268] sm:$0xff]
        %v322 = vld [vmem:[#allocation5 + $0x270] sm:$0xff]
        %v323 = vld [vmem:[#allocation5 + $0x278] sm:$0xff]
        %v324 = vld [vmem:[#allocation5 + $0x280] sm:$0xff]
        %v325 = vld [vmem:[#allocation5 + $0x288] sm:$0xff]
        %v326 = vld [vmem:[#allocation5 + $0x290] sm:$0xff]
        %v327 = vld [vmem:[#allocation5 + $0x298] sm:$0xff]
        %v328 = vld [vmem:[#allocation5 + $0x2a0] sm:$0xff]
        %v329 = vld [vmem:[#allocation5 + $0x2a8] sm:$0xff]
        %v330 = vld [vmem:[#allocation5 + $0x2b0] sm:$0xff]
        %v331 = vld [vmem:[#allocation5 + $0x2b8] sm:$0xff]
        %v332 = vld [vmem:[#allocation5 + $0x2c0] sm:$0xff]
        %v333 = vld [vmem:[#allocation5 + $0x2c8] sm:$0xff]
        %v334 = vld [vmem:[#allocation5 + $0x2d0] sm:$0xff]
        %v335 = vld [vmem:[#allocation5 + $0x2d8] sm:$0xff]
        %v336 = vld [vmem:[#allocation5 + $0x2e0] sm:$0xff]
        %v337 = vld [vmem:[#allocation5 + $0x2e8] sm:$0xff]
        %v338 = vld [vmem:[#allocation5 + $0x2f0] sm:$0xff]
        %v339 = vld [vmem:[#allocation5 + $0x2f8] sm:$0xff]
        %v340 = vld [vmem:[#allocation5 + $0x300] sm:$0xff]
        %v341 = vld [vmem:[#allocation5 + $0x308] sm:$0xff]
        %v342 = vld [vmem:[#allocation5 + $0x310] sm:$0xff]
        %v343 = vld [vmem:[#allocation5 + $0x318] sm:$0xff]
        %v344 = vld [vmem:[#allocation5 + $0x320] sm:$0xff]
        %v345 = vld [vmem:[#allocation5 + $0x328] sm:$0xff]
        %v346 = vld [vmem:[#allocation5 + $0x330] sm:$0xff]
        %v347 = vld [vmem:[#allocation5 + $0x338] sm:$0xff]
        %v348 = vld [vmem:[#allocation5 + $0x340] sm:$0xff]
        %v349 = vld [vmem:[#allocation5 + $0x348] sm:$0xff]
        %v350 = vld [vmem:[#allocation5 + $0x350] sm:$0xff]
        %v351 = vld [vmem:[#allocation5 + $0x358] sm:$0xff]
        %v352 = vld [vmem:[#allocation5 + $0x360] sm:$0xff]
        %v353 = vld [vmem:[#allocation5 + $0x368] sm:$0xff]
        %v354 = vld [vmem:[#allocation5 + $0x370] sm:$0xff]
        %v355 = vld [vmem:[#allocation5 + $0x378] sm:$0xff]
        %v356 = vld [vmem:[#allocation5 + $0x380] sm:$0xff]
        %v357 = vld [vmem:[#allocation5 + $0x388] sm:$0xff]
        %v358 = vld [vmem:[#allocation5 + $0x390] sm:$0xff]
        %v359 = vld [vmem:[#allocation5 + $0x398] sm:$0xff]
        %v360 = vld [vmem:[#allocation5 + $0x3a0] sm:$0xff]
        %v361 = vld [vmem:[#allocation5 + $0x3a8] sm:$0xff]
        %v362 = vld [vmem:[#allocation5 + $0x3b0] sm:$0xff]
        %v363 = vld [vmem:[#allocation5 + $0x3b8] sm:$0xff]
        %v364 = vld [vmem:[#allocation5 + $0x3c0] sm:$0xff]
        %v365 = vld [vmem:[#allocation5 + $0x3c8] sm:$0xff]
        %v366 = vld [vmem:[#allocation5 + $0x3d0] sm:$0xff]
        %v367 = vld [vmem:[#allocation5 + $0x3d8] sm:$0xff]
        %v368 = vld [vmem:[#allocation5 + $0x3e0] sm:$0xff]
        %v369 = vld [vmem:[#allocation5 + $0x3e8] sm:$0xff]
        %v370 = vld [vmem:[#allocation5 + $0x3f0] sm:$0xff]
        %v371 = vld [vmem:[#allocation5 + $0x3f8] sm:$0xff]
        %v372 = vld [vmem:[#allocation5 + $0x400] sm:$0xff]
        %v373 = vld [vmem:[#allocation5 + $0x408] sm:$0xff]
        %v374 = vld [vmem:[#allocation5 + $0x410] sm:$0xff]
        %v375 = vld [vmem:[#allocation5 + $0x418] sm:$0xff]
        %v376 = vld [vmem:[#allocation5 + $0x420] sm:$0xff]
        %v377 = vld [vmem:[#allocation5 + $0x428] sm:$0xff]
        %v378 = vld [vmem:[#allocation5 + $0x430] sm:$0xff]
        %v379 = vld [vmem:[#allocation5 + $0x438] sm:$0xff]
        %v380 = vld [vmem:[#allocation5 + $0x440] sm:$0xff]
        %v381 = vld [vmem:[#allocation5 + $0x448] sm:$0xff]
        %v382 = vld [vmem:[#allocation5 + $0x450] sm:$0xff]
        %v383 = vld [vmem:[#allocation5 + $0x458] sm:$0xff]
        %v384 = vld [vmem:[#allocation5 + $0x460] sm:$0xff]
        %v385 = vld [vmem:[#allocation5 + $0x468] sm:$0xff]
        %v386 = vld [vmem:[#allocation5 + $0x470] sm:$0xff]
        %v387 = vld [vmem:[#allocation5 + $0x478] sm:$0xff]
        %v388 = vld [vmem:[#allocation5 + $0x480] sm:$0xff]
        %v389 = vld [vmem:[#allocation5 + $0x488] sm:$0xff]
        %v390 = vld [vmem:[#allocation5 + $0x490] sm:$0xff]
        %v391 = vld [vmem:[#allocation5 + $0x498] sm:$0xff]
        %v392 = vld [vmem:[#allocation5 + $0x4a0] sm:$0xff]
        %v393 = vld [vmem:[#allocation5 + $0x4a8] sm:$0xff]
        %v394 = vld [vmem:[#allocation5 + $0x4b0] sm:$0xff]
        %v395 = vld [vmem:[#allocation5 + $0x4b8] sm:$0xff]
        %v396 = vld [vmem:[#allocation5 + $0x4c0] sm:$0xff]
        %v397 = vld [vmem:[#allocation5 + $0x4c8] sm:$0xff]
        %v398 = vld [vmem:[#allocation5 + $0x4d0] sm:$0xff]
        %v399 = vld [vmem:[#allocation5 + $0x4d8] sm:$0xff]
        %v400 = vld [vmem:[#allocation5 + $0x4e0] sm:$0xff]
        %v401 = vld [vmem:[#allocation5 + $0x4e8] sm:$0xff]
        %v402 = vld [vmem:[#allocation5 + $0x4f0] sm:$0xff]
        %v403 = vld [vmem:[#allocation5 + $0x4f8] sm:$0xff]
        %v404 = vld [vmem:[#allocation5 + $0x500] sm:$0xff]
        %v405 = vld [vmem:[#allocation5 + $0x508] sm:$0xff]
        %v406 = vld [vmem:[#allocation5 + $0x510] sm:$0xff]
        %v407 = vld [vmem:[#allocation5 + $0x518] sm:$0xff]
        %v408 = vld [vmem:[#allocation5 + $0x520] sm:$0xff]
        %v409 = vld [vmem:[#allocation5 + $0x528] sm:$0xff]
        %v410 = vld [vmem:[#allocation5 + $0x530] sm:$0xff]
        %v411 = vld [vmem:[#allocation5 + $0x538] sm:$0xff]
        %v412 = vld [vmem:[#allocation5 + $0x540] sm:$0xff]
        %v413 = vld [vmem:[#allocation5 + $0x548] sm:$0xff]
        %v414 = vld [vmem:[#allocation5 + $0x550] sm:$0xff]
        %v415 = vld [vmem:[#allocation5 + $0x558] sm:$0xff]
        %v416 = vld [vmem:[#allocation5 + $0x560] sm:$0xff]
        %v417 = vld [vmem:[#allocation5 + $0x568] sm:$0xff]
        %v418 = vld [vmem:[#allocation5 + $0x570] sm:$0xff]
        %v419 = vld [vmem:[#allocation5 + $0x578] sm:$0xff]
        %v420 = vld [vmem:[#allocation5 + $0x580] sm:$0xff]
        %v421 = vld [vmem:[#allocation5 + $0x588] sm:$0xff]
        %v422 = vld [vmem:[#allocation5 + $0x590] sm:$0xff]
        %v423 = vld [vmem:[#allocation5 + $0x598] sm:$0xff]
        %v424 = vld [vmem:[#allocation5 + $0x5a0] sm:$0xff]
        %v425 = vld [vmem:[#allocation5 + $0x5a8] sm:$0xff]
        %v426 = vld [vmem:[#allocation5 + $0x5b0] sm:$0xff]
        %v427 = vld [vmem:[#allocation5 + $0x5b8] sm:$0xff]
        %v428 = vld [vmem:[#allocation5 + $0x5c0] sm:$0xff]
        %v429 = vld [vmem:[#allocation5 + $0x5c8] sm:$0xff]
        %v430 = vld [vmem:[#allocation5 + $0x5d0] sm:$0xff]
        %v431 = vld [vmem:[#allocation5 + $0x5d8] sm:$0xff]
        %v432 = vld [vmem:[#allocation5 + $0x5e0] sm:$0xff]
        %v433 = vld [vmem:[#allocation5 + $0x5e8] sm:$0xff]
        %v434 = vld [vmem:[#allocation5 + $0x5f0] sm:$0xff]
        %v435 = vld [vmem:[#allocation5 + $0x5f8] sm:$0xff]
        %436 = vmatprep.subr.mxu0 %v335
        %437 = vmatpush1.msra.mxu0 %v334
        %438 = vmatprep.subr.mxu0 %v329
        %439 = vmatpush1.msra.mxu0 %v328
        %440 = vmatprep.subr.mxu0 %v323
        %441 = vmatpush1.msra.mxu0 %v322
        %442 = vmatprep.subr.mxu0 %v317
        %443 = vmatpush1.msra.mxu0 %v316
        %444 = vmatprep.subr.mxu0 %v311
        %445 = vmatpush1.msra.mxu0 %v310
        %446 = vmatprep.subr.mxu0 %v305
        %447 = vmatpush1.msra.mxu0 %v304
        %448 = vmatprep.subr.mxu0 %v299
        %449 = vmatpush1.msra.mxu0 %v298
        %450 = vmatprep.subr.mxu0 %v293
        %451 = vmatpush1.msra.mxu0 %v292
        %452 = vmatprep.subr.mxu0 %v287
        %453 = vmatpush1.msra.mxu0 %v286
        %454 = vmatprep.subr.mxu0 %v281
        %455 = vmatpush1.msra.mxu0 %v280
        %456 = vmatprep.subr.mxu0 %v275
        %457 = vmatpush1.msra.mxu0 %v274
        %458 = vmatprep.subr.mxu0 %v269
        %459 = vmatpush1.msra.mxu0 %v268
        %460 = vmatprep.subr.mxu0 %v263
        %461 = vmatpush1.msra.mxu0 %v262
        %462 = vmatprep.subr.mxu0 %v257
        %463 = vmatpush1.msra.mxu0 %v256
        %464 = vmatprep.subr.mxu0 %v251
        %465 = vmatpush1.msra.mxu0 %v250
        %466 = vmatprep.subr.mxu0 %v245
        %467 = vmatpush1.msra.mxu0 %v244
        %468 = vmatprep.subr.mxu0 %v431
        %469 = vmatpush2.msra.mxu0 %v430
        %470 = vmatprep.subr.mxu0 %v425
        %471 = vmatpush2.msra.mxu0 %v424
        %472 = vmatprep.subr.mxu0 %v419
        %473 = vmatpush2.msra.mxu0 %v418
        %474 = vmatprep.subr.mxu0 %v413
        %475 = vmatpush2.msra.mxu0 %v412
        %476 = vmatprep.subr.mxu0 %v407
        %477 = vmatpush2.msra.mxu0 %v406
        %478 = vmatprep.subr.mxu0 %v401
        %479 = vmatpush2.msra.mxu0 %v400
        %480 = vmatprep.subr.mxu0 %v395
        %481 = vmatpush2.msra.mxu0 %v394
        %482 = vmatprep.subr.mxu0 %v389
        %483 = vmatpush2.msra.mxu0 %v388
        %484 = vmatprep.subr.mxu0 %v383
        %485 = vmatpush2.msra.mxu0 %v382
        %486 = vmatprep.subr.mxu0 %v377
        %487 = vmatpush2.msra.mxu0 %v376
        %488 = vmatprep.subr.mxu0 %v371
        %489 = vmatpush2.msra.mxu0 %v370
        %490 = vmatprep.subr.mxu0 %v365
        %491 = vmatpush2.msra.mxu0 %v364
        %492 = vmatprep.subr.mxu0 %v359
        %493 = vmatpush2.msra.mxu0 %v358
        %494 = vmatprep.subr.mxu0 %v353
        %495 = vmatpush2.msra.mxu0 %v352
        %496 = vmatprep.subr.mxu0 %v347
        %497 = vmatpush2.msra.mxu0 %v346
        %498 = vmatprep.subr.mxu0 %v341
        %499 = vmatpush2.msra.mxu0 %v340
        %500 = vmatprep.mubr.f32.mxu0 %v181
        %501 = vmatmul.mubr.f32.gmra.mxu0 %v180
        %v502 = vpop.f32.mrf.mxu0
        %v503 = vadd.f32 0.0, %v502
        %v504 = vpop.f32.mrf.mxu0
        %v505 = vadd.f32 0.0, %v504
        %506 = vmatprep.mubr.f32.mxu0 %v183
        %507 = vmatmul.mubr.f32.gmra.mxu0 %v182
        %v508 = vpop.f32.mrf.mxu0
        %v509 = vadd.f32 0.0, %v508
        %v510 = vpop.f32.mrf.mxu0
        %v511 = vadd.f32 0.0, %v510
        %512 = vmatprep.mubr.f32.mxu0 %v185
        %513 = vmatmul.mubr.f32.gmra.mxu0 %v184
        %v514 = vpop.f32.mrf.mxu0
        %v515 = vadd.f32 0.0, %v514
        %v516 = vpop.f32.mrf.mxu0
        %v517 = vadd.f32 0.0, %v516
        %518 = vmatprep.mubr.f32.mxu0 %v187
        %519 = vmatmul.mubr.f32.gmra.mxu0 %v186
        %v520 = vpop.f32.mrf.mxu0
        %v521 = vadd.f32 0.0, %v520
        %v522 = vpop.f32.mrf.mxu0
        %v523 = vadd.f32 0.0, %v522
        %524 = vmatprep.mubr.f32.mxu0 %v189
        %525 = vmatmul.mubr.f32.gmra.mxu0 %v188
        %v526 = vpop.f32.mrf.mxu0
        %v527 = vadd.f32 0.0, %v526
        %v528 = vpop.f32.mrf.mxu0
        %v529 = vadd.f32 0.0, %v528
        %530 = vmatprep.mubr.f32.mxu0 %v191
        %531 = vmatmul.mubr.f32.gmra.mxu0 %v190
        %v532 = vpop.f32.mrf.mxu0
        %v533 = vadd.f32 0.0, %v532
        %v534 = vpop.f32.mrf.mxu0
        %v535 = vadd.f32 0.0, %v534
        %536 = vmatprep.mubr.f32.mxu0 %v193
        %537 = vmatmul.mubr.f32.gmra.mxu0 %v192
        %v538 = vpop.f32.mrf.mxu0
        %v539 = vadd.f32 0.0, %v538
        %v540 = vpop.f32.mrf.mxu0
        %v541 = vadd.f32 0.0, %v540
        %542 = vmatprep.mubr.f32.mxu0 %v195
        %543 = vmatmul.mubr.f32.gmra.mxu0 %v194
        %v544 = vpop.f32.mrf.mxu0
        %v545 = vadd.f32 0.0, %v544
        %v546 = vpop.f32.mrf.mxu0
        %v547 = vadd.f32 0.0, %v546
        %548 = vmatprep.mubr.f32.mxu0 %v197
        %549 = vmatmul.mubr.f32.gmra.mxu0 %v196
        %v550 = vpop.f32.mrf.mxu0
        %v551 = vadd.f32 0.0, %v550
        %v552 = vpop.f32.mrf.mxu0
        %v553 = vadd.f32 0.0, %v552
        %554 = vmatprep.mubr.f32.mxu0 %v199
        %555 = vmatmul.mubr.f32.gmra.mxu0 %v198
        %v556 = vpop.f32.mrf.mxu0
        %v557 = vadd.f32 0.0, %v556
        %v558 = vpop.f32.mrf.mxu0
        %v559 = vadd.f32 0.0, %v558
        %560 = vmatprep.mubr.f32.mxu0 %v201
        %561 = vmatmul.mubr.f32.gmra.mxu0 %v200
        %v562 = vpop.f32.mrf.mxu0
        %v563 = vadd.f32 0.0, %v562
        %v564 = vpop.f32.mrf.mxu0
        %v565 = vadd.f32 0.0, %v564
        %566 = vmatprep.mubr.f32.mxu0 %v203
        %567 = vmatmul.mubr.f32.gmra.mxu0 %v202
        %v568 = vpop.f32.mrf.mxu0
        %v569 = vadd.f32 0.0, %v568
        %v570 = vpop.f32.mrf.mxu0
        %v571 = vadd.f32 0.0, %v570
        %572 = vmatprep.mubr.f32.mxu0 %v205
        %573 = vmatmul.mubr.f32.gmra.mxu0 %v204
        %v574 = vpop.f32.mrf.mxu0
        %v575 = vadd.f32 0.0, %v574
        %v576 = vpop.f32.mrf.mxu0
        %v577 = vadd.f32 0.0, %v576
        %578 = vmatprep.mubr.f32.mxu0 %v207
        %579 = vmatmul.mubr.f32.gmra.mxu0 %v206
        %v580 = vpop.f32.mrf.mxu0
        %v581 = vadd.f32 0.0, %v580
        %v582 = vpop.f32.mrf.mxu0
        %v583 = vadd.f32 0.0, %v582
        %584 = vmatprep.mubr.f32.mxu0 %v209
        %585 = vmatmul.mubr.f32.gmra.mxu0 %v208
        %v586 = vpop.f32.mrf.mxu0
        %v587 = vadd.f32 0.0, %v586
        %v588 = vpop.f32.mrf.mxu0
        %v589 = vadd.f32 0.0, %v588
        %590 = vmatprep.mubr.f32.mxu0 %v211
        %591 = vmatmul.mubr.f32.gmra.mxu0 %v210
        %v592 = vpop.f32.mrf.mxu0
        %v593 = vadd.f32 0.0, %v592
        %v594 = vpop.f32.mrf.mxu0
        %v595 = vadd.f32 0.0, %v594
        %596 = vmatprep.mubr.f32.mxu0 %v213
        %597 = vmatmul.mubr.f32.gmra.mxu0 %v212
        %v598 = vpop.f32.mrf.mxu0
        %v599 = vadd.f32 0.0, %v598
        %v600 = vpop.f32.mrf.mxu0
        %v601 = vadd.f32 0.0, %v600
        %602 = vmatprep.mubr.f32.mxu0 %v215
        %603 = vmatmul.mubr.f32.gmra.mxu0 %v214
        %v604 = vpop.f32.mrf.mxu0
        %v605 = vadd.f32 0.0, %v604
        %v606 = vpop.f32.mrf.mxu0
        %v607 = vadd.f32 0.0, %v606
        %608 = vmatprep.mubr.f32.mxu0 %v217
        %609 = vmatmul.mubr.f32.gmra.mxu0 %v216
        %v610 = vpop.f32.mrf.mxu0
        %v611 = vadd.f32 0.0, %v610
        %v612 = vpop.f32.mrf.mxu0
        %v613 = vadd.f32 0.0, %v612
        %614 = vmatprep.mubr.f32.mxu0 %v219
        %615 = vmatmul.mubr.f32.gmra.mxu0 %v218
        %v616 = vpop.f32.mrf.mxu0
        %v617 = vadd.f32 0.0, %v616
        %v618 = vpop.f32.mrf.mxu0
        %v619 = vadd.f32 0.0, %v618
        %620 = vmatprep.mubr.f32.mxu0 %v221
        %621 = vmatmul.mubr.f32.gmra.mxu0 %v220
        %v622 = vpop.f32.mrf.mxu0
        %v623 = vadd.f32 0.0, %v622
        %v624 = vpop.f32.mrf.mxu0
        %v625 = vadd.f32 0.0, %v624
        %626 = vmatprep.mubr.f32.mxu0 %v223
        %627 = vmatmul.mubr.f32.gmra.mxu0 %v222
        %v628 = vpop.f32.mrf.mxu0
        %v629 = vadd.f32 0.0, %v628
        %v630 = vpop.f32.mrf.mxu0
        %v631 = vadd.f32 0.0, %v630
        %632 = vmatprep.mubr.f32.mxu0 %v225
        %633 = vmatmul.mubr.f32.gmra.mxu0 %v224
        %v634 = vpop.f32.mrf.mxu0
        %v635 = vadd.f32 0.0, %v634
        %v636 = vpop.f32.mrf.mxu0
        %v637 = vadd.f32 0.0, %v636
        %638 = vmatprep.mubr.f32.mxu0 %v227
        %639 = vmatmul.mubr.f32.gmra.mxu0 %v226
        %v640 = vpop.f32.mrf.mxu0
        %v641 = vadd.f32 0.0, %v640
        %v642 = vpop.f32.mrf.mxu0
        %v643 = vadd.f32 0.0, %v642
        %644 = vmatprep.mubr.f32.mxu0 %v229
        %645 = vmatmul.mubr.f32.gmra.mxu0 %v228
        %v646 = vpop.f32.mrf.mxu0
        %v647 = vadd.f32 0.0, %v646
        %v648 = vpop.f32.mrf.mxu0
        %v649 = vadd.f32 0.0, %v648
        %650 = vmatprep.mubr.f32.mxu0 %v231
        %651 = vmatmul.mubr.f32.gmra.mxu0 %v230
        %v652 = vpop.f32.mrf.mxu0
        %v653 = vadd.f32 0.0, %v652
        %v654 = vpop.f32.mrf.mxu0
        %v655 = vadd.f32 0.0, %v654
        %656 = vmatprep.mubr.f32.mxu0 %v233
        %657 = vmatmul.mubr.f32.gmra.mxu0 %v232
        %v658 = vpop.f32.mrf.mxu0
        %v659 = vadd.f32 0.0, %v658
        %v660 = vpop.f32.mrf.mxu0
        %v661 = vadd.f32 0.0, %v660
        %662 = vmatprep.mubr.f32.mxu0 %v235
        %663 = vmatmul.mubr.f32.gmra.mxu0 %v234
        %v664 = vpop.f32.mrf.mxu0
        %v665 = vadd.f32 0.0, %v664
        %v666 = vpop.f32.mrf.mxu0
        %v667 = vadd.f32 0.0, %v666
        %668 = vmatprep.mubr.f32.mxu0 %v237
        %669 = vmatmul.mubr.f32.gmra.mxu0 %v236
        %v670 = vpop.f32.mrf.mxu0
        %v671 = vadd.f32 0.0, %v670
        %v672 = vpop.f32.mrf.mxu0
        %v673 = vadd.f32 0.0, %v672
        %674 = vmatprep.mubr.f32.mxu0 %v239
        %675 = vmatmul.mubr.f32.gmra.mxu0 %v238
        %v676 = vpop.f32.mrf.mxu0
        %v677 = vadd.f32 0.0, %v676
        %v678 = vpop.f32.mrf.mxu0
        %v679 = vadd.f32 0.0, %v678
        %680 = vmatprep.mubr.f32.mxu0 %v241
        %681 = vmatmul.mubr.f32.gmra.mxu0 %v240
        %v682 = vpop.f32.mrf.mxu0
        %v683 = vadd.f32 0.0, %v682
        %v684 = vpop.f32.mrf.mxu0
        %v685 = vadd.f32 0.0, %v684
        %686 = vmatprep.mubr.f32.mxu0 %v243
        %687 = vmatmul.mubr.f32.gmra.mxu0 %v242
        %v688 = vpop.f32.mrf.mxu0
        %v689 = vadd.f32 0.0, %v688
        %v690 = vpop.f32.mrf.mxu0
        %v691 = vadd.f32 0.0, %v690
        %692 = vdwg.mxu0
        %693 = vmatprep.subr.mxu0 %v337
        %694 = vmatpush1.msra.mxu0 %v336
        %695 = vmatprep.subr.mxu0 %v331
        %696 = vmatpush1.msra.mxu0 %v330
        %697 = vmatprep.subr.mxu0 %v325
        %698 = vmatpush1.msra.mxu0 %v324
        %699 = vmatprep.subr.mxu0 %v319
        %700 = vmatpush1.msra.mxu0 %v318
        %701 = vmatprep.subr.mxu0 %v313
        %702 = vmatpush1.msra.mxu0 %v312
        %703 = vmatprep.subr.mxu0 %v307
        %704 = vmatpush1.msra.mxu0 %v306
        %705 = vmatprep.subr.mxu0 %v301
        %706 = vmatpush1.msra.mxu0 %v300
        %707 = vmatprep.subr.mxu0 %v295
        %708 = vmatpush1.msra.mxu0 %v294
        %709 = vmatprep.subr.mxu0 %v289
        %710 = vmatpush1.msra.mxu0 %v288
        %711 = vmatprep.subr.mxu0 %v283
        %712 = vmatpush1.msra.mxu0 %v282
        %713 = vmatprep.subr.mxu0 %v277
        %714 = vmatpush1.msra.mxu0 %v276
        %715 = vmatprep.subr.mxu0 %v271
        %716 = vmatpush1.msra.mxu0 %v270
        %717 = vmatprep.subr.mxu0 %v265
        %718 = vmatpush1.msra.mxu0 %v264
        %719 = vmatprep.subr.mxu0 %v259
        %720 = vmatpush1.msra.mxu0 %v258
        %721 = vmatprep.subr.mxu0 %v253
        %722 = vmatpush1.msra.mxu0 %v252
        %723 = vmatprep.subr.mxu0 %v247
        %724 = vmatpush1.msra.mxu0 %v246
        %725 = vmatprep.subr.mxu0 %v433
        %726 = vmatpush2.msra.mxu0 %v432
        %727 = vmatprep.subr.mxu0 %v427
        %728 = vmatpush2.msra.mxu0 %v426
        %729 = vmatprep.subr.mxu0 %v421
        %730 = vmatpush2.msra.mxu0 %v420
        %731 = vmatprep.subr.mxu0 %v415
        %732 = vmatpush2.msra.mxu0 %v414
        %733 = vmatprep.subr.mxu0 %v409
        %734 = vmatpush2.msra.mxu0 %v408
        %735 = vmatprep.subr.mxu0 %v403
        %736 = vmatpush2.msra.mxu0 %v402
        %737 = vmatprep.subr.mxu0 %v397
        %738 = vmatpush2.msra.mxu0 %v396
        %739 = vmatprep.subr.mxu0 %v391
        %740 = vmatpush2.msra.mxu0 %v390
        %741 = vmatprep.subr.mxu0 %v385
        %742 = vmatpush2.msra.mxu0 %v384
        %743 = vmatprep.subr.mxu0 %v379
        %744 = vmatpush2.msra.mxu0 %v378
        %745 = vmatprep.subr.mxu0 %v373
        %746 = vmatpush2.msra.mxu0 %v372
        %747 = vmatprep.subr.mxu0 %v367
        %748 = vmatpush2.msra.mxu0 %v366
        %749 = vmatprep.subr.mxu0 %v361
        %750 = vmatpush2.msra.mxu0 %v360
        %751 = vmatprep.subr.mxu0 %v355
        %752 = vmatpush2.msra.mxu0 %v354
        %753 = vmatprep.subr.mxu0 %v349
        %754 = vmatpush2.msra.mxu0 %v348
        %755 = vmatprep.subr.mxu0 %v343
        %756 = vmatpush2.msra.mxu0 %v342
        %757 = vmatprep.mubr.f32.mxu0 %v181
        %758 = vmatmul.mubr.f32.gmra.mxu0 %v180
        %v759 = vpop.f32.mrf.mxu0
        %v760 = vadd.f32 0.0, %v759
        %v761 = vpop.f32.mrf.mxu0
        %v762 = vadd.f32 0.0, %v761
        %763 = vmatprep.mubr.f32.mxu0 %v183
        %764 = vmatmul.mubr.f32.gmra.mxu0 %v182
        %v765 = vpop.f32.mrf.mxu0
        %v766 = vadd.f32 0.0, %v765
        %v767 = vpop.f32.mrf.mxu0
        %v768 = vadd.f32 0.0, %v767
        %769 = vmatprep.mubr.f32.mxu0 %v185
        %770 = vmatmul.mubr.f32.gmra.mxu0 %v184
        %v771 = vpop.f32.mrf.mxu0
        %v772 = vadd.f32 0.0, %v771
        %v773 = vpop.f32.mrf.mxu0
        %v774 = vadd.f32 0.0, %v773
        %775 = vmatprep.mubr.f32.mxu0 %v187
        %776 = vmatmul.mubr.f32.gmra.mxu0 %v186
        %v777 = vpop.f32.mrf.mxu0
        %v778 = vadd.f32 0.0, %v777
        %v779 = vpop.f32.mrf.mxu0
        %v780 = vadd.f32 0.0, %v779
        %781 = vmatprep.mubr.f32.mxu0 %v189
        %782 = vmatmul.mubr.f32.gmra.mxu0 %v188
        %v783 = vpop.f32.mrf.mxu0
        %v784 = vadd.f32 0.0, %v783
        %v785 = vpop.f32.mrf.mxu0
        %v786 = vadd.f32 0.0, %v785
        %787 = vmatprep.mubr.f32.mxu0 %v191
        %788 = vmatmul.mubr.f32.gmra.mxu0 %v190
        %v789 = vpop.f32.mrf.mxu0
        %v790 = vadd.f32 0.0, %v789
        %v791 = vpop.f32.mrf.mxu0
        %v792 = vadd.f32 0.0, %v791
        %793 = vmatprep.mubr.f32.mxu0 %v193
        %794 = vmatmul.mubr.f32.gmra.mxu0 %v192
        %v795 = vpop.f32.mrf.mxu0
        %v796 = vadd.f32 0.0, %v795
        %v797 = vpop.f32.mrf.mxu0
        %v798 = vadd.f32 0.0, %v797
        %799 = vmatprep.mubr.f32.mxu0 %v195
        %800 = vmatmul.mubr.f32.gmra.mxu0 %v194
        %v801 = vpop.f32.mrf.mxu0
        %v802 = vadd.f32 0.0, %v801
        %v803 = vpop.f32.mrf.mxu0
        %v804 = vadd.f32 0.0, %v803
        %805 = vmatprep.mubr.f32.mxu0 %v197
        %806 = vmatmul.mubr.f32.gmra.mxu0 %v196
        %v807 = vpop.f32.mrf.mxu0
        %v808 = vadd.f32 0.0, %v807
        %v809 = vpop.f32.mrf.mxu0
        %v810 = vadd.f32 0.0, %v809
        %811 = vmatprep.mubr.f32.mxu0 %v199
        %812 = vmatmul.mubr.f32.gmra.mxu0 %v198
        %v813 = vpop.f32.mrf.mxu0
        %v814 = vadd.f32 0.0, %v813
        %v815 = vpop.f32.mrf.mxu0
        %v816 = vadd.f32 0.0, %v815
        %817 = vmatprep.mubr.f32.mxu0 %v201
        %818 = vmatmul.mubr.f32.gmra.mxu0 %v200
        %v819 = vpop.f32.mrf.mxu0
        %v820 = vadd.f32 0.0, %v819
        %v821 = vpop.f32.mrf.mxu0
        %v822 = vadd.f32 0.0, %v821
        %823 = vmatprep.mubr.f32.mxu0 %v203
        %824 = vmatmul.mubr.f32.gmra.mxu0 %v202
        %v825 = vpop.f32.mrf.mxu0
        %v826 = vadd.f32 0.0, %v825
        %v827 = vpop.f32.mrf.mxu0
        %v828 = vadd.f32 0.0, %v827
        %829 = vmatprep.mubr.f32.mxu0 %v205
        %830 = vmatmul.mubr.f32.gmra.mxu0 %v204
        %v831 = vpop.f32.mrf.mxu0
        %v832 = vadd.f32 0.0, %v831
        %v833 = vpop.f32.mrf.mxu0
        %v834 = vadd.f32 0.0, %v833
        %835 = vmatprep.mubr.f32.mxu0 %v207
        %836 = vmatmul.mubr.f32.gmra.mxu0 %v206
        %v837 = vpop.f32.mrf.mxu0
        %v838 = vadd.f32 0.0, %v837
        %v839 = vpop.f32.mrf.mxu0
        %v840 = vadd.f32 0.0, %v839
        %841 = vmatprep.mubr.f32.mxu0 %v209
        %842 = vmatmul.mubr.f32.gmra.mxu0 %v208
        %v843 = vpop.f32.mrf.mxu0
        %v844 = vadd.f32 0.0, %v843
        %v845 = vpop.f32.mrf.mxu0
        %v846 = vadd.f32 0.0, %v845
        %847 = vmatprep.mubr.f32.mxu0 %v211
        %848 = vmatmul.mubr.f32.gmra.mxu0 %v210
        %v849 = vpop.f32.mrf.mxu0
        %v850 = vadd.f32 0.0, %v849
        %v851 = vpop.f32.mrf.mxu0
        %v852 = vadd.f32 0.0, %v851
        %853 = vmatprep.mubr.f32.mxu0 %v213
        %854 = vmatmul.mubr.f32.gmra.mxu0 %v212
        %v855 = vpop.f32.mrf.mxu0
        %v856 = vadd.f32 0.0, %v855
        %v857 = vpop.f32.mrf.mxu0
        %v858 = vadd.f32 0.0, %v857
        %859 = vmatprep.mubr.f32.mxu0 %v215
        %860 = vmatmul.mubr.f32.gmra.mxu0 %v214
        %v861 = vpop.f32.mrf.mxu0
        %v862 = vadd.f32 0.0, %v861
        %v863 = vpop.f32.mrf.mxu0
        %v864 = vadd.f32 0.0, %v863
        %865 = vmatprep.mubr.f32.mxu0 %v217
        %866 = vmatmul.mubr.f32.gmra.mxu0 %v216
        %v867 = vpop.f32.mrf.mxu0
        %v868 = vadd.f32 0.0, %v867
        %v869 = vpop.f32.mrf.mxu0
        %v870 = vadd.f32 0.0, %v869
        %871 = vmatprep.mubr.f32.mxu0 %v219
        %872 = vmatmul.mubr.f32.gmra.mxu0 %v218
        %v873 = vpop.f32.mrf.mxu0
        %v874 = vadd.f32 0.0, %v873
        %v875 = vpop.f32.mrf.mxu0
        %v876 = vadd.f32 0.0, %v875
        %877 = vmatprep.mubr.f32.mxu0 %v221
        %878 = vmatmul.mubr.f32.gmra.mxu0 %v220
        %v879 = vpop.f32.mrf.mxu0
        %v880 = vadd.f32 0.0, %v879
        %v881 = vpop.f32.mrf.mxu0
        %v882 = vadd.f32 0.0, %v881
        %883 = vmatprep.mubr.f32.mxu0 %v223
        %884 = vmatmul.mubr.f32.gmra.mxu0 %v222
        %v885 = vpop.f32.mrf.mxu0
        %v886 = vadd.f32 0.0, %v885
        %v887 = vpop.f32.mrf.mxu0
        %v888 = vadd.f32 0.0, %v887
        %889 = vmatprep.mubr.f32.mxu0 %v225
        %890 = vmatmul.mubr.f32.gmra.mxu0 %v224
        %v891 = vpop.f32.mrf.mxu0
        %v892 = vadd.f32 0.0, %v891
        %v893 = vpop.f32.mrf.mxu0
        %v894 = vadd.f32 0.0, %v893
        %895 = vmatprep.mubr.f32.mxu0 %v227
        %896 = vmatmul.mubr.f32.gmra.mxu0 %v226
        %v897 = vpop.f32.mrf.mxu0
        %v898 = vadd.f32 0.0, %v897
        %v899 = vpop.f32.mrf.mxu0
        %v900 = vadd.f32 0.0, %v899
        %901 = vmatprep.mubr.f32.mxu0 %v229
        %902 = vmatmul.mubr.f32.gmra.mxu0 %v228
        %v903 = vpop.f32.mrf.mxu0
        %v904 = vadd.f32 0.0, %v903
        %v905 = vpop.f32.mrf.mxu0
        %v906 = vadd.f32 0.0, %v905
        %907 = vmatprep.mubr.f32.mxu0 %v231
        %908 = vmatmul.mubr.f32.gmra.mxu0 %v230
        %v909 = vpop.f32.mrf.mxu0
        %v910 = vadd.f32 0.0, %v909
        %v911 = vpop.f32.mrf.mxu0
        %v912 = vadd.f32 0.0, %v911
        %913 = vmatprep.mubr.f32.mxu0 %v233
        %914 = vmatmul.mubr.f32.gmra.mxu0 %v232
        %v915 = vpop.f32.mrf.mxu0
        %v916 = vadd.f32 0.0, %v915
        %v917 = vpop.f32.mrf.mxu0
        %v918 = vadd.f32 0.0, %v917
        %919 = vmatprep.mubr.f32.mxu0 %v235
        %920 = vmatmul.mubr.f32.gmra.mxu0 %v234
        %v921 = vpop.f32.mrf.mxu0
        %v922 = vadd.f32 0.0, %v921
        %v923 = vpop.f32.mrf.mxu0
        %v924 = vadd.f32 0.0, %v923
        %925 = vmatprep.mubr.f32.mxu0 %v237
        %926 = vmatmul.mubr.f32.gmra.mxu0 %v236
        %v927 = vpop.f32.mrf.mxu0
        %v928 = vadd.f32 0.0, %v927
        %v929 = vpop.f32.mrf.mxu0
        %v930 = vadd.f32 0.0, %v929
        %931 = vmatprep.mubr.f32.mxu0 %v239
        %932 = vmatmul.mubr.f32.gmra.mxu0 %v238
        %v933 = vpop.f32.mrf.mxu0
        %v934 = vadd.f32 0.0, %v933
        %v935 = vpop.f32.mrf.mxu0
        %v936 = vadd.f32 0.0, %v935
        %937 = vmatprep.mubr.f32.mxu0 %v241
        %938 = vmatmul.mubr.f32.gmra.mxu0 %v240
        %v939 = vpop.f32.mrf.mxu0
        %v940 = vadd.f32 0.0, %v939
        %v941 = vpop.f32.mrf.mxu0
        %v942 = vadd.f32 0.0, %v941
        %943 = vmatprep.mubr.f32.mxu0 %v243
        %944 = vmatmul.mubr.f32.gmra.mxu0 %v242
        %v945 = vpop.f32.mrf.mxu0
        %v946 = vadd.f32 0.0, %v945
        %v947 = vpop.f32.mrf.mxu0
        %v948 = vadd.f32 0.0, %v947
        %949 = vdwg.mxu0
        %950 = vmatprep.subr.mxu0 %v339
        %951 = vmatpush1.msra.mxu0 %v338
        %952 = vmatprep.subr.mxu0 %v333
        %953 = vmatpush1.msra.mxu0 %v332
        %954 = vmatprep.subr.mxu0 %v327
        %955 = vmatpush1.msra.mxu0 %v326
        %956 = vmatprep.subr.mxu0 %v321
        %957 = vmatpush1.msra.mxu0 %v320
        %958 = vmatprep.subr.mxu0 %v315
        %959 = vmatpush1.msra.mxu0 %v314
        %960 = vmatprep.subr.mxu0 %v309
        %961 = vmatpush1.msra.mxu0 %v308
        %962 = vmatprep.subr.mxu0 %v303
        %963 = vmatpush1.msra.mxu0 %v302
        %964 = vmatprep.subr.mxu0 %v297
        %965 = vmatpush1.msra.mxu0 %v296
        %966 = vmatprep.subr.mxu0 %v291
        %967 = vmatpush1.msra.mxu0 %v290
        %968 = vmatprep.subr.mxu0 %v285
        %969 = vmatpush1.msra.mxu0 %v284
        %970 = vmatprep.subr.mxu0 %v279
        %971 = vmatpush1.msra.mxu0 %v278
        %972 = vmatprep.subr.mxu0 %v273
        %973 = vmatpush1.msra.mxu0 %v272
        %974 = vmatprep.subr.mxu0 %v267
        %975 = vmatpush1.msra.mxu0 %v266
        %976 = vmatprep.subr.mxu0 %v261
        %977 = vmatpush1.msra.mxu0 %v260
        %978 = vmatprep.subr.mxu0 %v255
        %979 = vmatpush1.msra.mxu0 %v254
        %980 = vmatprep.subr.mxu0 %v249
        %981 = vmatpush1.msra.mxu0 %v248
        %982 = vmatprep.subr.mxu0 %v435
        %983 = vmatpush2.msra.mxu0 %v434
        %984 = vmatprep.subr.mxu0 %v429
        %985 = vmatpush2.msra.mxu0 %v428
        %986 = vmatprep.subr.mxu0 %v423
        %987 = vmatpush2.msra.mxu0 %v422
        %988 = vmatprep.subr.mxu0 %v417
        %989 = vmatpush2.msra.mxu0 %v416
        %990 = vmatprep.subr.mxu0 %v411
        %991 = vmatpush2.msra.mxu0 %v410
        %992 = vmatprep.subr.mxu0 %v405
        %993 = vmatpush2.msra.mxu0 %v404
        %994 = vmatprep.subr.mxu0 %v399
        %995 = vmatpush2.msra.mxu0 %v398
        %996 = vmatprep.subr.mxu0 %v393
        %997 = vmatpush2.msra.mxu0 %v392
        %998 = vmatprep.subr.mxu0 %v387
        %999 = vmatpush2.msra.mxu0 %v386
        %1000 = vmatprep.subr.mxu0 %v381
        %1001 = vmatpush2.msra.mxu0 %v380
        %1002 = vmatprep.subr.mxu0 %v375
        %1003 = vmatpush2.msra.mxu0 %v374
        %1004 = vmatprep.subr.mxu0 %v369
        %1005 = vmatpush2.msra.mxu0 %v368
        %1006 = vmatprep.subr.mxu0 %v363
        %1007 = vmatpush2.msra.mxu0 %v362
        %1008 = vmatprep.subr.mxu0 %v357
        %1009 = vmatpush2.msra.mxu0 %v356
        %1010 = vmatprep.subr.mxu0 %v351
        %1011 = vmatpush2.msra.mxu0 %v350
        %1012 = vmatprep.subr.mxu0 %v345
        %1013 = vmatpush2.msra.mxu0 %v344
        %1014 = vmatprep.mubr.f32.mxu0 %v181
        %1015 = vmatmul.mubr.f32.gmra.mxu0 %v180
        %v1016 = vpop.f32.mrf.mxu0
        %v1017 = vadd.f32 0.0, %v1016
        %v1018 = vpop.f32.mrf.mxu0
        %v1019 = vadd.f32 0.0, %v1018
        %1020 = vmatprep.mubr.f32.mxu0 %v183
        %1021 = vmatmul.mubr.f32.gmra.mxu0 %v182
        %v1022 = vpop.f32.mrf.mxu0
        %v1023 = vadd.f32 0.0, %v1022
        %v1024 = vpop.f32.mrf.mxu0
        %v1025 = vadd.f32 0.0, %v1024
        %1026 = vmatprep.mubr.f32.mxu0 %v185
        %1027 = vmatmul.mubr.f32.gmra.mxu0 %v184
        %v1028 = vpop.f32.mrf.mxu0
        %v1029 = vadd.f32 0.0, %v1028
        %v1030 = vpop.f32.mrf.mxu0
        %v1031 = vadd.f32 0.0, %v1030
        %1032 = vmatprep.mubr.f32.mxu0 %v187
        %1033 = vmatmul.mubr.f32.gmra.mxu0 %v186
        %v1034 = vpop.f32.mrf.mxu0
        %v1035 = vadd.f32 0.0, %v1034
        %v1036 = vpop.f32.mrf.mxu0
        %v1037 = vadd.f32 0.0, %v1036
        %1038 = vmatprep.mubr.f32.mxu0 %v189
        %1039 = vmatmul.mubr.f32.gmra.mxu0 %v188
        %v1040 = vpop.f32.mrf.mxu0
        %v1041 = vadd.f32 0.0, %v1040
        %v1042 = vpop.f32.mrf.mxu0
        %v1043 = vadd.f32 0.0, %v1042
        %1044 = vmatprep.mubr.f32.mxu0 %v191
        %1045 = vmatmul.mubr.f32.gmra.mxu0 %v190
        %v1046 = vpop.f32.mrf.mxu0
        %v1047 = vadd.f32 0.0, %v1046
        %v1048 = vpop.f32.mrf.mxu0
        %v1049 = vadd.f32 0.0, %v1048
        %1050 = vmatprep.mubr.f32.mxu0 %v193
        %1051 = vmatmul.mubr.f32.gmra.mxu0 %v192
        %v1052 = vpop.f32.mrf.mxu0
        %v1053 = vadd.f32 0.0, %v1052
        %v1054 = vpop.f32.mrf.mxu0
        %v1055 = vadd.f32 0.0, %v1054
        %1056 = vmatprep.mubr.f32.mxu0 %v195
        %1057 = vmatmul.mubr.f32.gmra.mxu0 %v194
        %v1058 = vpop.f32.mrf.mxu0
        %v1059 = vadd.f32 0.0, %v1058
        %v1060 = vpop.f32.mrf.mxu0
        %v1061 = vadd.f32 0.0, %v1060
        %1062 = vmatprep.mubr.f32.mxu0 %v197
        %1063 = vmatmul.mubr.f32.gmra.mxu0 %v196
        %v1064 = vpop.f32.mrf.mxu0
        %v1065 = vadd.f32 0.0, %v1064
        %v1066 = vpop.f32.mrf.mxu0
        %v1067 = vadd.f32 0.0, %v1066
        %1068 = vmatprep.mubr.f32.mxu0 %v199
        %1069 = vmatmul.mubr.f32.gmra.mxu0 %v198
        %v1070 = vpop.f32.mrf.mxu0
        %v1071 = vadd.f32 0.0, %v1070
        %v1072 = vpop.f32.mrf.mxu0
        %v1073 = vadd.f32 0.0, %v1072
        %1074 = vmatprep.mubr.f32.mxu0 %v201
        %1075 = vmatmul.mubr.f32.gmra.mxu0 %v200
        %v1076 = vpop.f32.mrf.mxu0
        %v1077 = vadd.f32 0.0, %v1076
        %v1078 = vpop.f32.mrf.mxu0
        %v1079 = vadd.f32 0.0, %v1078
        %1080 = vmatprep.mubr.f32.mxu0 %v203
        %1081 = vmatmul.mubr.f32.gmra.mxu0 %v202
        %v1082 = vpop.f32.mrf.mxu0
        %v1083 = vadd.f32 0.0, %v1082
        %v1084 = vpop.f32.mrf.mxu0
        %v1085 = vadd.f32 0.0, %v1084
        %1086 = vmatprep.mubr.f32.mxu0 %v205
        %1087 = vmatmul.mubr.f32.gmra.mxu0 %v204
        %v1088 = vpop.f32.mrf.mxu0
        %v1089 = vadd.f32 0.0, %v1088
        %v1090 = vpop.f32.mrf.mxu0
        %v1091 = vadd.f32 0.0, %v1090
        %1092 = vmatprep.mubr.f32.mxu0 %v207
        %1093 = vmatmul.mubr.f32.gmra.mxu0 %v206
        %v1094 = vpop.f32.mrf.mxu0
        %v1095 = vadd.f32 0.0, %v1094
        %v1096 = vpop.f32.mrf.mxu0
        %v1097 = vadd.f32 0.0, %v1096
        %1098 = vmatprep.mubr.f32.mxu0 %v209
        %1099 = vmatmul.mubr.f32.gmra.mxu0 %v208
        %v1100 = vpop.f32.mrf.mxu0
        %v1101 = vadd.f32 0.0, %v1100
        %v1102 = vpop.f32.mrf.mxu0
        %v1103 = vadd.f32 0.0, %v1102
        %1104 = vmatprep.mubr.f32.mxu0 %v211
        %1105 = vmatmul.mubr.f32.gmra.mxu0 %v210
        %v1106 = vpop.f32.mrf.mxu0
        %v1107 = vadd.f32 0.0, %v1106
        %v1108 = vpop.f32.mrf.mxu0
        %v1109 = vadd.f32 0.0, %v1108
        %1110 = vmatprep.mubr.f32.mxu0 %v213
        %1111 = vmatmul.mubr.f32.gmra.mxu0 %v212
        %v1112 = vpop.f32.mrf.mxu0
        %v1113 = vadd.f32 0.0, %v1112
        %v1114 = vpop.f32.mrf.mxu0
        %v1115 = vadd.f32 0.0, %v1114
        %1116 = vmatprep.mubr.f32.mxu0 %v215
        %1117 = vmatmul.mubr.f32.gmra.mxu0 %v214
        %v1118 = vpop.f32.mrf.mxu0
        %v1119 = vadd.f32 0.0, %v1118
        %v1120 = vpop.f32.mrf.mxu0
        %v1121 = vadd.f32 0.0, %v1120
        %1122 = vmatprep.mubr.f32.mxu0 %v217
        %1123 = vmatmul.mubr.f32.gmra.mxu0 %v216
        %v1124 = vpop.f32.mrf.mxu0
        %v1125 = vadd.f32 0.0, %v1124
        %v1126 = vpop.f32.mrf.mxu0
        %v1127 = vadd.f32 0.0, %v1126
        %1128 = vmatprep.mubr.f32.mxu0 %v219
        %1129 = vmatmul.mubr.f32.gmra.mxu0 %v218
        %v1130 = vpop.f32.mrf.mxu0
        %v1131 = vadd.f32 0.0, %v1130
        %v1132 = vpop.f32.mrf.mxu0
        %v1133 = vadd.f32 0.0, %v1132
        %1134 = vmatprep.mubr.f32.mxu0 %v221
        %1135 = vmatmul.mubr.f32.gmra.mxu0 %v220
        %v1136 = vpop.f32.mrf.mxu0
        %v1137 = vadd.f32 0.0, %v1136
        %v1138 = vpop.f32.mrf.mxu0
        %v1139 = vadd.f32 0.0, %v1138
        %1140 = vmatprep.mubr.f32.mxu0 %v223
        %1141 = vmatmul.mubr.f32.gmra.mxu0 %v222
        %v1142 = vpop.f32.mrf.mxu0
        %v1143 = vadd.f32 0.0, %v1142
        %v1144 = vpop.f32.mrf.mxu0
        %v1145 = vadd.f32 0.0, %v1144
        %1146 = vmatprep.mubr.f32.mxu0 %v225
        %1147 = vmatmul.mubr.f32.gmra.mxu0 %v224
        %v1148 = vpop.f32.mrf.mxu0
        %v1149 = vadd.f32 0.0, %v1148
        %v1150 = vpop.f32.mrf.mxu0
        %v1151 = vadd.f32 0.0, %v1150
        %1152 = vmatprep.mubr.f32.mxu0 %v227
        %1153 = vmatmul.mubr.f32.gmra.mxu0 %v226
        %v1154 = vpop.f32.mrf.mxu0
        %v1155 = vadd.f32 0.0, %v1154
        %v1156 = vpop.f32.mrf.mxu0
        %v1157 = vadd.f32 0.0, %v1156
        %1158 = vmatprep.mubr.f32.mxu0 %v229
        %1159 = vmatmul.mubr.f32.gmra.mxu0 %v228
        %v1160 = vpop.f32.mrf.mxu0
        %v1161 = vadd.f32 0.0, %v1160
        %v1162 = vpop.f32.mrf.mxu0
        %v1163 = vadd.f32 0.0, %v1162
        %1164 = vmatprep.mubr.f32.mxu0 %v231
        %1165 = vmatmul.mubr.f32.gmra.mxu0 %v230
        %v1166 = vpop.f32.mrf.mxu0
        %v1167 = vadd.f32 0.0, %v1166
        %v1168 = vpop.f32.mrf.mxu0
        %v1169 = vadd.f32 0.0, %v1168
        %1170 = vmatprep.mubr.f32.mxu0 %v233
        %1171 = vmatmul.mubr.f32.gmra.mxu0 %v232
        %v1172 = vpop.f32.mrf.mxu0
        %v1173 = vadd.f32 0.0, %v1172
        %v1174 = vpop.f32.mrf.mxu0
        %v1175 = vadd.f32 0.0, %v1174
        %1176 = vmatprep.mubr.f32.mxu0 %v235
        %1177 = vmatmul.mubr.f32.gmra.mxu0 %v234
        %v1178 = vpop.f32.mrf.mxu0
        %v1179 = vadd.f32 0.0, %v1178
        %v1180 = vpop.f32.mrf.mxu0
        %v1181 = vadd.f32 0.0, %v1180
        %1182 = vmatprep.mubr.f32.mxu0 %v237
        %1183 = vmatmul.mubr.f32.gmra.mxu0 %v236
        %v1184 = vpop.f32.mrf.mxu0
        %v1185 = vadd.f32 0.0, %v1184
        %v1186 = vpop.f32.mrf.mxu0
        %v1187 = vadd.f32 0.0, %v1186
        %1188 = vmatprep.mubr.f32.mxu0 %v239
        %1189 = vmatmul.mubr.f32.gmra.mxu0 %v238
        %v1190 = vpop.f32.mrf.mxu0
        %v1191 = vadd.f32 0.0, %v1190
        %v1192 = vpop.f32.mrf.mxu0
        %v1193 = vadd.f32 0.0, %v1192
        %1194 = vmatprep.mubr.f32.mxu0 %v241
        %1195 = vmatmul.mubr.f32.gmra.mxu0 %v240
        %v1196 = vpop.f32.mrf.mxu0
        %v1197 = vadd.f32 0.0, %v1196
        %v1198 = vpop.f32.mrf.mxu0
        %v1199 = vadd.f32 0.0, %v1198
        %1200 = vmatprep.mubr.f32.mxu0 %v243
        %1201 = vmatmul.mubr.f32.gmra.mxu0 %v242
        %v1202 = vpop.f32.mrf.mxu0
        %v1203 = vadd.f32 0.0, %v1202
        %v1204 = vpop.f32.mrf.mxu0
        %v1205 = vadd.f32 0.0, %v1204
        %1206 = vdwg.mxu0
        %1207 = vst [vmem:[%s177] sm:$0xff] %v503
        %1208 = vst [vmem:[%s177 + $0x8] sm:$0xff] %v505
        %1209 = vst [vmem:[%s177 + $0x10] sm:$0xff] %v760
        %1210 = vst [vmem:[%s177 + $0x18] sm:$0xff] %v762
        %1211 = vst [vmem:[%s177 + $0x20] sm:$0xff] %v1017
        %1212 = vst [vmem:[%s177 + $0x28] sm:$0xff] %v1019
        %1213 = vst [vmem:[%s177 + $0x30] sm:$0xff] %v509
        %1214 = vst [vmem:[%s177 + $0x38] sm:$0xff] %v511
        %1215 = vst [vmem:[%s177 + $0x40] sm:$0xff] %v766
        %1216 = vst [vmem:[%s177 + $0x48] sm:$0xff] %v768
        %1217 = vst [vmem:[%s177 + $0x50] sm:$0xff] %v1023
        %1218 = vst [vmem:[%s177 + $0x58] sm:$0xff] %v1025
        %1219 = vst [vmem:[%s177 + $0x60] sm:$0xff] %v515
        %1220 = vst [vmem:[%s177 + $0x68] sm:$0xff] %v517
        %1221 = vst [vmem:[%s177 + $0x70] sm:$0xff] %v772
        %1222 = vst [vmem:[%s177 + $0x78] sm:$0xff] %v774
        %1223 = vst [vmem:[%s177 + $0x80] sm:$0xff] %v1029
        %1224 = vst [vmem:[%s177 + $0x88] sm:$0xff] %v1031
        %1225 = vst [vmem:[%s177 + $0x90] sm:$0xff] %v521
        %1226 = vst [vmem:[%s177 + $0x98] sm:$0xff] %v523
        %1227 = vst [vmem:[%s177 + $0xa0] sm:$0xff] %v778
        %1228 = vst [vmem:[%s177 + $0xa8] sm:$0xff] %v780
        %1229 = vst [vmem:[%s177 + $0xb0] sm:$0xff] %v1035
        %1230 = vst [vmem:[%s177 + $0xb8] sm:$0xff] %v1037
        %1231 = vst [vmem:[%s177 + $0xc0] sm:$0xff] %v527
        %1232 = vst [vmem:[%s177 + $0xc8] sm:$0xff] %v529
        %1233 = vst [vmem:[%s177 + $0xd0] sm:$0xff] %v784
        %1234 = vst [vmem:[%s177 + $0xd8] sm:$0xff] %v786
        %1235 = vst [vmem:[%s177 + $0xe0] sm:$0xff] %v1041
        %1236 = vst [vmem:[%s177 + $0xe8] sm:$0xff] %v1043
        %1237 = vst [vmem:[%s177 + $0xf0] sm:$0xff] %v533
        %1238 = vst [vmem:[%s177 + $0xf8] sm:$0xff] %v535
        %1239 = vst [vmem:[%s177 + $0x100] sm:$0xff] %v790
        %1240 = vst [vmem:[%s177 + $0x108] sm:$0xff] %v792
        %1241 = vst [vmem:[%s177 + $0x110] sm:$0xff] %v1047
        %1242 = vst [vmem:[%s177 + $0x118] sm:$0xff] %v1049
        %1243 = vst [vmem:[%s177 + $0x120] sm:$0xff] %v539
        %1244 = vst [vmem:[%s177 + $0x128] sm:$0xff] %v541
        %1245 = vst [vmem:[%s177 + $0x130] sm:$0xff] %v796
        %1246 = vst [vmem:[%s177 + $0x138] sm:$0xff] %v798
        %1247 = vst [vmem:[%s177 + $0x140] sm:$0xff] %v1053
        %1248 = vst [vmem:[%s177 + $0x148] sm:$0xff] %v1055
        %1249 = vst [vmem:[%s177 + $0x150] sm:$0xff] %v545
        %1250 = vst [vmem:[%s177 + $0x158] sm:$0xff] %v547
        %1251 = vst [vmem:[%s177 + $0x160] sm:$0xff] %v802
        %1252 = vst [vmem:[%s177 + $0x168] sm:$0xff] %v804
        %1253 = vst [vmem:[%s177 + $0x170] sm:$0xff] %v1059
        %1254 = vst [vmem:[%s177 + $0x178] sm:$0xff] %v1061
        %1255 = vst [vmem:[%s177 + $0x180] sm:$0xff] %v551
        %1256 = vst [vmem:[%s177 + $0x188] sm:$0xff] %v553
        %1257 = vst [vmem:[%s177 + $0x190] sm:$0xff] %v808
        %1258 = vst [vmem:[%s177 + $0x198] sm:$0xff] %v810
        %1259 = vst [vmem:[%s177 + $0x1a0] sm:$0xff] %v1065
        %1260 = vst [vmem:[%s177 + $0x1a8] sm:$0xff] %v1067
        %1261 = vst [vmem:[%s177 + $0x1b0] sm:$0xff] %v557
        %1262 = vst [vmem:[%s177 + $0x1b8] sm:$0xff] %v559
        %1263 = vst [vmem:[%s177 + $0x1c0] sm:$0xff] %v814
        %1264 = vst [vmem:[%s177 + $0x1c8] sm:$0xff] %v816
        %1265 = vst [vmem:[%s177 + $0x1d0] sm:$0xff] %v1071
        %1266 = vst [vmem:[%s177 + $0x1d8] sm:$0xff] %v1073
        %1267 = vst [vmem:[%s177 + $0x1e0] sm:$0xff] %v563
        %1268 = vst [vmem:[%s177 + $0x1e8] sm:$0xff] %v565
        %1269 = vst [vmem:[%s177 + $0x1f0] sm:$0xff] %v820
        %1270 = vst [vmem:[%s177 + $0x1f8] sm:$0xff] %v822
        %1271 = vst [vmem:[%s177 + $0x200] sm:$0xff] %v1077
        %1272 = vst [vmem:[%s177 + $0x208] sm:$0xff] %v1079
        %1273 = vst [vmem:[%s177 + $0x210] sm:$0xff] %v569
        %1274 = vst [vmem:[%s177 + $0x218] sm:$0xff] %v571
        %1275 = vst [vmem:[%s177 + $0x220] sm:$0xff] %v826
        %1276 = vst [vmem:[%s177 + $0x228] sm:$0xff] %v828
        %1277 = vst [vmem:[%s177 + $0x230] sm:$0xff] %v1083
        %1278 = vst [vmem:[%s177 + $0x238] sm:$0xff] %v1085
        %1279 = vst [vmem:[%s177 + $0x240] sm:$0xff] %v575
        %1280 = vst [vmem:[%s177 + $0x248] sm:$0xff] %v577
        %1281 = vst [vmem:[%s177 + $0x250] sm:$0xff] %v832
        %1282 = vst [vmem:[%s177 + $0x258] sm:$0xff] %v834
        %1283 = vst [vmem:[%s177 + $0x260] sm:$0xff] %v1089
        %1284 = vst [vmem:[%s177 + $0x268] sm:$0xff] %v1091
        %1285 = vst [vmem:[%s177 + $0x270] sm:$0xff] %v581
        %1286 = vst [vmem:[%s177 + $0x278] sm:$0xff] %v583
        %1287 = vst [vmem:[%s177 + $0x280] sm:$0xff] %v838
        %1288 = vst [vmem:[%s177 + $0x288] sm:$0xff] %v840
        %1289 = vst [vmem:[%s177 + $0x290] sm:$0xff] %v1095
        %1290 = vst [vmem:[%s177 + $0x298] sm:$0xff] %v1097
        %1291 = vst [vmem:[%s177 + $0x2a0] sm:$0xff] %v587
        %1292 = vst [vmem:[%s177 + $0x2a8] sm:$0xff] %v589
        %1293 = vst [vmem:[%s177 + $0x2b0] sm:$0xff] %v844
        %1294 = vst [vmem:[%s177 + $0x2b8] sm:$0xff] %v846
        %1295 = vst [vmem:[%s177 + $0x2c0] sm:$0xff] %v1101
        %1296 = vst [vmem:[%s177 + $0x2c8] sm:$0xff] %v1103
        %1297 = vst [vmem:[%s177 + $0x2d0] sm:$0xff] %v593
        %1298 = vst [vmem:[%s177 + $0x2d8] sm:$0xff] %v595
        %1299 = vst [vmem:[%s177 + $0x2e0] sm:$0xff] %v850
        %1300 = vst [vmem:[%s177 + $0x2e8] sm:$0xff] %v852
        %1301 = vst [vmem:[%s177 + $0x2f0] sm:$0xff] %v1107
        %1302 = vst [vmem:[%s177 + $0x2f8] sm:$0xff] %v1109
        %1303 = vst [vmem:[%s177 + $0x300] sm:$0xff] %v599
        %1304 = vst [vmem:[%s177 + $0x308] sm:$0xff] %v601
        %1305 = vst [vmem:[%s177 + $0x310] sm:$0xff] %v856
        %1306 = vst [vmem:[%s177 + $0x318] sm:$0xff] %v858
        %1307 = vst [vmem:[%s177 + $0x320] sm:$0xff] %v1113
        %1308 = vst [vmem:[%s177 + $0x328] sm:$0xff] %v1115
        %1309 = vst [vmem:[%s177 + $0x330] sm:$0xff] %v605
        %1310 = vst [vmem:[%s177 + $0x338] sm:$0xff] %v607
        %1311 = vst [vmem:[%s177 + $0x340] sm:$0xff] %v862
        %1312 = vst [vmem:[%s177 + $0x348] sm:$0xff] %v864
        %1313 = vst [vmem:[%s177 + $0x350] sm:$0xff] %v1119
        %1314 = vst [vmem:[%s177 + $0x358] sm:$0xff] %v1121
        %1315 = vst [vmem:[%s177 + $0x360] sm:$0xff] %v611
        %1316 = vst [vmem:[%s177 + $0x368] sm:$0xff] %v613
        %1317 = vst [vmem:[%s177 + $0x370] sm:$0xff] %v868
        %1318 = vst [vmem:[%s177 + $0x378] sm:$0xff] %v870
        %1319 = vst [vmem:[%s177 + $0x380] sm:$0xff] %v1125
        %1320 = vst [vmem:[%s177 + $0x388] sm:$0xff] %v1127
        %1321 = vst [vmem:[%s177 + $0x390] sm:$0xff] %v617
        %1322 = vst [vmem:[%s177 + $0x398] sm:$0xff] %v619
        %1323 = vst [vmem:[%s177 + $0x3a0] sm:$0xff] %v874
        %1324 = vst [vmem:[%s177 + $0x3a8] sm:$0xff] %v876
        %1325 = vst [vmem:[%s177 + $0x3b0] sm:$0xff] %v1131
        %1326 = vst [vmem:[%s177 + $0x3b8] sm:$0xff] %v1133
        %1327 = vst [vmem:[%s177 + $0x3c0] sm:$0xff] %v623
        %1328 = vst [vmem:[%s177 + $0x3c8] sm:$0xff] %v625
        %1329 = vst [vmem:[%s177 + $0x3d0] sm:$0xff] %v880
        %1330 = vst [vmem:[%s177 + $0x3d8] sm:$0xff] %v882
        %1331 = vst [vmem:[%s177 + $0x3e0] sm:$0xff] %v1137
        %1332 = vst [vmem:[%s177 + $0x3e8] sm:$0xff] %v1139
        %1333 = vst [vmem:[%s177 + $0x3f0] sm:$0xff] %v629
        %1334 = vst [vmem:[%s177 + $0x3f8] sm:$0xff] %v631
        %1335 = vst [vmem:[%s177 + $0x400] sm:$0xff] %v886
        %1336 = vst [vmem:[%s177 + $0x408] sm:$0xff] %v888
        %1337 = vst [vmem:[%s177 + $0x410] sm:$0xff] %v1143
        %1338 = vst [vmem:[%s177 + $0x418] sm:$0xff] %v1145
        %1339 = vst [vmem:[%s177 + $0x420] sm:$0xff] %v635
        %1340 = vst [vmem:[%s177 + $0x428] sm:$0xff] %v637
        %1341 = vst [vmem:[%s177 + $0x430] sm:$0xff] %v892
        %1342 = vst [vmem:[%s177 + $0x438] sm:$0xff] %v894
        %1343 = vst [vmem:[%s177 + $0x440] sm:$0xff] %v1149
        %1344 = vst [vmem:[%s177 + $0x448] sm:$0xff] %v1151
        %1345 = vst [vmem:[%s177 + $0x450] sm:$0xff] %v641
        %1346 = vst [vmem:[%s177 + $0x458] sm:$0xff] %v643
        %1347 = vst [vmem:[%s177 + $0x460] sm:$0xff] %v898
        %1348 = vst [vmem:[%s177 + $0x468] sm:$0xff] %v900
        %1349 = vst [vmem:[%s177 + $0x470] sm:$0xff] %v1155
        %1350 = vst [vmem:[%s177 + $0x478] sm:$0xff] %v1157
        %1351 = vst [vmem:[%s177 + $0x480] sm:$0xff] %v647
        %1352 = vst [vmem:[%s177 + $0x488] sm:$0xff] %v649
        %1353 = vst [vmem:[%s177 + $0x490] sm:$0xff] %v904
        %1354 = vst [vmem:[%s177 + $0x498] sm:$0xff] %v906
        %1355 = vst [vmem:[%s177 + $0x4a0] sm:$0xff] %v1161
        %1356 = vst [vmem:[%s177 + $0x4a8] sm:$0xff] %v1163
        %1357 = vst [vmem:[%s177 + $0x4b0] sm:$0xff] %v653
        %1358 = vst [vmem:[%s177 + $0x4b8] sm:$0xff] %v655
        %1359 = vst [vmem:[%s177 + $0x4c0] sm:$0xff] %v910
        %1360 = vst [vmem:[%s177 + $0x4c8] sm:$0xff] %v912
        %1361 = vst [vmem:[%s177 + $0x4d0] sm:$0xff] %v1167
        %1362 = vst [vmem:[%s177 + $0x4d8] sm:$0xff] %v1169
        %1363 = vst [vmem:[%s177 + $0x4e0] sm:$0xff] %v659
        %1364 = vst [vmem:[%s177 + $0x4e8] sm:$0xff] %v661
        %1365 = vst [vmem:[%s177 + $0x4f0] sm:$0xff] %v916
        %1366 = vst [vmem:[%s177 + $0x4f8] sm:$0xff] %v918
        %1367 = vst [vmem:[%s177 + $0x500] sm:$0xff] %v1173
        %1368 = vst [vmem:[%s177 + $0x508] sm:$0xff] %v1175
        %1369 = vst [vmem:[%s177 + $0x510] sm:$0xff] %v665
        %1370 = vst [vmem:[%s177 + $0x518] sm:$0xff] %v667
        %1371 = vst [vmem:[%s177 + $0x520] sm:$0xff] %v922
        %1372 = vst [vmem:[%s177 + $0x528] sm:$0xff] %v924
        %1373 = vst [vmem:[%s177 + $0x530] sm:$0xff] %v1179
        %1374 = vst [vmem:[%s177 + $0x538] sm:$0xff] %v1181
        %1375 = vst [vmem:[%s177 + $0x540] sm:$0xff] %v671
        %1376 = vst [vmem:[%s177 + $0x548] sm:$0xff] %v673
        %1377 = vst [vmem:[%s177 + $0x550] sm:$0xff] %v928
        %1378 = vst [vmem:[%s177 + $0x558] sm:$0xff] %v930
        %1379 = vst [vmem:[%s177 + $0x560] sm:$0xff] %v1185
        %1380 = vst [vmem:[%s177 + $0x568] sm:$0xff] %v1187
        %1381 = vst [vmem:[%s177 + $0x570] sm:$0xff] %v677
        %1382 = vst [vmem:[%s177 + $0x578] sm:$0xff] %v679
        %1383 = vst [vmem:[%s177 + $0x580] sm:$0xff] %v934
        %1384 = vst [vmem:[%s177 + $0x588] sm:$0xff] %v936
        %1385 = vst [vmem:[%s177 + $0x590] sm:$0xff] %v1191
        %1386 = vst [vmem:[%s177 + $0x598] sm:$0xff] %v1193
        %1387 = vst [vmem:[%s177 + $0x5a0] sm:$0xff] %v683
        %1388 = vst [vmem:[%s177 + $0x5a8] sm:$0xff] %v685
        %1389 = vst [vmem:[%s177 + $0x5b0] sm:$0xff] %v940
        %1390 = vst [vmem:[%s177 + $0x5b8] sm:$0xff] %v942
        %1391 = vst [vmem:[%s177 + $0x5c0] sm:$0xff] %v1197
        %1392 = vst [vmem:[%s177 + $0x5c8] sm:$0xff] %v1199
        %1393 = vst [vmem:[%s177 + $0x5d0] sm:$0xff] %v689
        %1394 = vst [vmem:[%s177 + $0x5d8] sm:$0xff] %v691
        %1395 = vst [vmem:[%s177 + $0x5e0] sm:$0xff] %v946
        %1396 = vst [vmem:[%s177 + $0x5e8] sm:$0xff] %v948
        %1397 = vst [vmem:[%s177 + $0x5f0] sm:$0xff] %v1203
        %1398 = vst [vmem:[%s177 + $0x5f8] sm:$0xff] %v1205
        %s1399 = sand.u32 %s75, 1
        %s1400 = scalar_lea.sflag [#allocation4], %s1399
        %s1401 = sand.u32 %s75, 1
        %s1402 = smul.addr %s1401, 1536
        %s1403 = scalar_lea.vmem [#allocation7], %s1402
        // Predicated region
        $region37: #{tpu_custom_call.1} parent=27 // pred_check
          %p1404 = pneg %p85
        $region38: #{tpu_custom_call.1} parent=27 // pred_check_branch
          %1406 = sbr.rel (%p1404) target = $region40
        $region39: #{tpu_custom_call.1} parent=27 // pred_region
          %s1407 = smul.u32 32, %s20
          %s1409 = ssub.s32 24576, 24576
          %1410 = vsyncadd %s1400, %s1409
          %s1411 = smul.addr %s1407, 6
          %s1412 = smul.addr %s1411, 128
          %s1413 = scalar_lea.hbm %s2, %s1412
          %s1414 = sshll.u32 %s1403, 4
          %s1415 = int_to_ptr.vmem [resolvable:$true] %s1414
          %1420 = dma.vmem_to_hbm [thread:$0]  %s1415, 24576, %s1413, %s1400, 768, 768, 48
        $region40: #{tpu_custom_call.1} parent=27 // pred_fallthru
          _
      $region28: #{tpu_custom_call.1} parent=5 // pred_fallthru
        _
      %p1421 = scmp.le.s32.totalorder 2, %s15
      // Predicated region
      $region41: #{tpu_custom_call.1} parent=5 // pred_check
        %p1422 = pneg %p1421
      $region42: #{tpu_custom_call.1} parent=5 // pred_check_branch
        %1424 = sbr.rel (%p1422) target = $region44
      $region43: #{tpu_custom_call.1} parent=5 // pred_region
        %s1425 = ssub.s32 %s15, 2
        // Predicated region
        $region45: #{tpu_custom_call.1} parent=43 // pred_check
          %p1426 = pneg %p91
        $region46: #{tpu_custom_call.1} parent=43 // pred_check_branch
          %1428 = sbr.rel (%p1426) target = $region48
        $region47: #{tpu_custom_call.1} parent=43 // pred_region
          %s1429 = sand.u32 %s76, 1
          %s1430 = scalar_lea.sflag [#allocation4], %s1429
          %s1431 = sand.u32 %s76, 1
          %s1432 = smul.addr %s1431, 1536
          %s1433 = scalar_lea.vmem [#allocation7], %s1432
          %1434 = dma.done %s1430, 24576
        $region48: #{tpu_custom_call.1} parent=43 // pred_fallthru
          _
      $region44: #{tpu_custom_call.1} parent=5 // pred_fallthru
        _
    $region6: #{tpu_custom_call.1} parent=1 // loop_footer
      %s19 = sadd.s32 1, %s15
    $region7: #{tpu_custom_call.1} parent=1 // loop_footer_branch
      %14 = sbr.rel target = $region3
    $region8: #{tpu_custom_call.1} parent=1 // loop_exit
      _
    %1435 = vsyncpa [#allocation3], 1
    %s1436 = scalar_lea.sflag [#allocation3], 1
    %1437 = vsyncpa %s1436, 1
    %1438 = vsyncpa [#allocation6], 1
    %1439 = vsyncpa [#allocation4], 1
    %s1440 = scalar_lea.sflag [#allocation4], 1
    %1441 = vsyncpa %s1440, 1

</llo_original>
